<compile_context>
chip_gen: v7x
topology: tpu7x:2x2x1
jax: 0.10.0
libtpu: 0.0.40
codegen_flags: <defaults>
</compile_context>

<pallas_src>
import functools

import jax
import jax.numpy as jnp
from jax.experimental import pallas as pl
from jax.experimental.pallas import tpu as pltpu

EPS = 1e-5
_VMEM_LIMIT = 32 * 1024 * 1024   # explicit scoped-VMEM budget (safe on v5e/v6e/v7x)


def _pick_nb(n, cin, cout, hw):
    """Batch elements per grid step: big enough to amortize the ~0.35us/step
    overhead, small enough to stay far below the VMEM limit, divides N, and
    keeps the grid >= 2 when possible (v7x megacore)."""
    per_b = hw * (cout * 2 + cin * 4 + cout * 4)     # heaviest stage bytes / example
    target = 2 * 1024 * 1024                         # ~2 MB moved per grid step
    nb = max(1, min(n, target // max(per_b, 1)))
    if n >= 2:
        nb = max(1, min(nb, n // 2))                 # keep grid >= 2
    while n % nb != 0:
        nb -= 1
    return nb


# ---------------------------------------------------------------------------
# Stage 1/2 kernel:
#   y = bn_affine(x) [optional relu];  c = conv3x1(y)  (three accumulating dots)
# Emits c in bf16 plus lane-dense per-tile (sum, sum_sq) partials so the
# wrapper can build the next BatchNorm's scale/shift (two-pass training BN).
# ---------------------------------------------------------------------------
def _bn_conv3_kernel(x_ref, scale_ref, shift_ref, w_ref, nf_ref, nl_ref,
                     o_ref, sum_ref, ssq_ref, *, width, relu, nb, hw, stat_w):
    scale = scale_ref[...]          # (cin, 1)  f32
    shift = shift_ref[...]          # (cin, 1)  f32
    nf = nf_ref[...]                # (1, hw)   f32, 0.0 where h == 0
    nl = nl_ref[...]                # (1, hw)   f32, 0.0 where h == H-1
    w0 = w_ref[0]                   # (cout, cin) bf16, tap h-1
    w1 = w_ref[1]                   # (cout, cin) bf16, tap h
    w2 = w_ref[2]                   # (cout, cin) bf16, tap h+1
    cout = w0.shape[0]

    acc_s = jnp.zeros((cout, stat_w), jnp.float32)
    acc_q = jnp.zeros((cout, stat_w), jnp.float32)

    for b in range(nb):
        y = x_ref[b].astype(jnp.float32) * scale + shift      # BN affine (f32)
        if relu:
            y = jnp.maximum(y, 0.0)
        # Conv taps: neighbours at +/- `width` along the flattened H*W axis.
        # Rolls are circular, but every wrapped position is an h==0 / h==H-1
        # position and gets zeroed by the precomputed masks (PyTorch zero pad).
        prev = pltpu.roll(y, width, axis=1) * nf
        nxt = pltpu.roll(y, hw - width, axis=1) * nl
        c = jnp.dot(w1, y.astype(jnp.bfloat16), preferred_element_type=jnp.float32)
        c = c + jnp.dot(w0, prev.astype(jnp.bfloat16),
                        preferred_element_type=jnp.float32)
        c = c + jnp.dot(w2, nxt.astype(jnp.bfloat16),
                        preferred_element_type=jnp.float32)
        # NOTE: conv bias intentionally omitted (cancelled by the next BN).
        o_ref[b] = c.astype(jnp.bfloat16)

        # Lane-dense BN partial stats (no cross-lane reduce, no width-1 stores).
        if stat_w == 1:
            acc_s = acc_s + jnp.sum(c, axis=1, keepdims=True)
            acc_q = acc_q + jnp.sum(c * c, axis=1, keepdims=True)
        else:
            for j in range(hw // stat_w):
                v = c[:, j * stat_w:(j + 1) * stat_w]
                acc_s = acc_s + v
                acc_q = acc_q + v * v

    sum_ref[...] = acc_s[None]
    ssq_ref[...] = acc_q[None]


# ---------------------------------------------------------------------------
# Stage 3 kernel:  out = bn3_affine(c2) + (Wup @ x + bup)   (1x1 residual conv)
# ---------------------------------------------------------------------------
def _bn_residual_kernel(c_ref, x_ref, scale_ref, shift_ref, wup_ref, bup_ref,
                        o_ref, *, nb):
    scale = scale_ref[...]
    shift = shift_ref[...]
    wup = wup_ref[...]              # (cout, cin) bf16
    bup = bup_ref[...]              # (cout, 1)   f32
    for b in range(nb):
        up = jnp.dot(wup, x_ref[b].astype(jnp.bfloat16),
                     preferred_element_type=jnp.float32) + bup
        o_ref[b] = c_ref[b].astype(jnp.float32) * scale + shift + up


def _conv_stage(x3d, scale, shift, wstack, nf, nl, *, width, relu, nb):
    n, cin, hw = x3d.shape
    cout = wstack.shape[1]
    g = n // nb
    sw = 128 if hw % 128 == 0 else 1
    kernel = functools.partial(_bn_conv3_kernel, width=width, relu=relu,
                               nb=nb, hw=hw, stat_w=sw)
    return pl.pallas_call(
        kernel,
        grid=(g,),
        in_specs=[
            pl.BlockSpec((nb, cin, hw), lambda i: (i, 0, 0)),
            pl.BlockSpec((cin, 1), lambda i: (0, 0)),
            pl.BlockSpec((cin, 1), lambda i: (0, 0)),
            pl.BlockSpec((3, cout, cin), lambda i: (0, 0, 0)),
            pl.BlockSpec((1, hw), lambda i: (0, 0)),
            pl.BlockSpec((1, hw), lambda i: (0, 0)),
        ],
        out_specs=(
            pl.BlockSpec((nb, cout, hw), lambda i: (i, 0, 0)),
            pl.BlockSpec((1, cout, sw), lambda i: (i, 0, 0)),
            pl.BlockSpec((1, cout, sw), lambda i: (i, 0, 0)),
        ),
        out_shape=(
            jax.ShapeDtypeStruct((n, cout, hw), jnp.bfloat16),   # bf16 intermediate
            jax.ShapeDtypeStruct((g, cout, sw), jnp.float32),
            jax.ShapeDtypeStruct((g, cout, sw), jnp.float32),
        ),
        compiler_params=pltpu.CompilerParams(
            dimension_semantics=("parallel",),
            vmem_limit_bytes=_VMEM_LIMIT),
    )(x3d, scale, shift, wstack, nf, nl)


def _residual_stage(c2, x3d, scale, shift, wup, bup, *, nb):
    n, cout, hw = c2.shape
    cin = x3d.shape[1]
    g = n // nb
    kernel = functools.partial(_bn_residual_kernel, nb=nb)
    return pl.pallas_call(
        kernel,
        grid=(g,),
        in_specs=[
            pl.BlockSpec((nb, cout, hw), lambda i: (i, 0, 0)),
            pl.BlockSpec((nb, cin, hw), lambda i: (i, 0, 0)),
            pl.BlockSpec((cout, 1), lambda i: (0, 0)),
            pl.BlockSpec((cout, 1), lambda i: (0, 0)),
            pl.BlockSpec((cout, cin), lambda i: (0, 0)),
            pl.BlockSpec((cout, 1), lambda i: (0, 0)),
        ],
        out_specs=pl.BlockSpec((nb, cout, hw), lambda i: (i, 0, 0)),
        out_shape=jax.ShapeDtypeStruct((n, cout, hw), jnp.float32),
        compiler_params=pltpu.CompilerParams(
            dimension_semantics=("parallel",),
            vmem_limit_bytes=_VMEM_LIMIT),
    )(c2, x3d, scale, shift, wup, bup)


def _bn_affine_from_partials(psum, pssq, gamma, beta, count):
    # single-pass stats: var = E[x^2] - E[x]^2 (biased, training-mode BN).
    # Cancellation-prone when |mean| >> std; fine at the current tolerance.
    s = jnp.sum(psum, axis=(0, 2))
    q = jnp.sum(pssq, axis=(0, 2))
    mean = s / count
    var = jnp.maximum(q / count - mean * mean, 0.0)
    scale = gamma * jax.lax.rsqrt(var + EPS)
    shift = beta - mean * scale
    return scale.reshape(-1, 1), shift.reshape(-1, 1)


@jax.jit
def res_block2d_forward(x_nchw, params):
    """x_nchw: (N, Cin, H, W) float32; params in PyTorch tensor shapes."""
    (w1, b1, w2, b2, wup, bup, g1, be1, g2, be2, g3, be3) = params
    del b1, b2   # exactly cancelled by bn2 / bn3 (training-mode batch stats)
    n, cin, h, w = x_nchw.shape
    cout, _, kh, kw = w1.shape
    if kh != 3 or kw != 1 or wup.shape[2:] != (1, 1):
        # TODO(synk): kernel==5 / last_kernel==5 variant is not implemented.
        raise NotImplementedError("res_block2d Pallas kernel supports kernel==3 only")

    hw = h * w
    nb = _pick_nb(n, cin, cout, hw)

    # ---- native-layout view (no XLA transpose, reshape is free) ----
    x3d = x_nchw.reshape(n, cin, hw)

    # ---- parameter packing (once, wrapper-side) ----
    def col(v):
        return v.reshape(-1, 1).astype(jnp.float32)

    w1stack = jnp.stack([w1[:, :, k, 0] for k in range(3)], axis=0).astype(jnp.bfloat16)
    w2stack = jnp.stack([w2[:, :, k, 0] for k in range(3)], axis=0).astype(jnp.bfloat16)
    wupm = wup[:, :, 0, 0].astype(jnp.bfloat16)
    bupc = col(bup)

    # Precomputed boundary masks along the flattened H*W axis (h = p // W).
    hidx = jnp.arange(hw, dtype=jnp.int32) // w
    nf = (hidx != 0).astype(jnp.float32).reshape(1, hw)        # not first H row
    nl = (hidx != h - 1).astype(jnp.float32).reshape(1, hw)    # not last H row

    # bn1 stats depend only on x -> fold to per-channel scale/shift here.
    mean1 = jnp.mean(x_nchw, axis=(0, 2, 3))
    var1 = jnp.var(x_nchw, axis=(0, 2, 3))
    sc1 = g1 * jax.lax.rsqrt(var1 + EPS)
    sh1 = be1 - mean1 * sc1

    count = n * h * w

    # ---- stage 1: conv1(bn1(x)) + per-tile partial stats for bn2 ----
    c1, s1, q1 = _conv_stage(x3d, col(sc1), col(sh1), w1stack, nf, nl,
                             width=w, relu=False, nb=nb)
    sc2, sh2 = _bn_affine_from_partials(s1, q1, g2, be2, count)

    # ---- stage 2: conv2(relu(bn2(c1))) + per-tile partial stats for bn3 ----
    c2, s2, q2 = _conv_stage(c1, sc2, sh2, w2stack, nf, nl,
                             width=w, relu=True, nb=nb)
    sc3, sh3 = _bn_affine_from_partials(s2, q2, g3, be3, count)

    # ---- stage 3: bn3(c2) + 1x1 residual conv on the raw input ----
    out3d = _residual_stage(c2, x3d, sc3, sh3, wupm, bupc, nb=nb)

    return out3d.reshape(n, cout, h, w)        # free reshape, still NCHW


def ref_forward(x, params):
    """Pure-JAX f32 reference of the PyTorch forward (NCHW, training-mode BN)."""
    (w1, b1, w2, b2, wup, bup, g1, be1, g2, be2, g3, be3) = params

    def bn(v, g, b):
        mean = v.mean(axis=(0, 2, 3), keepdims=True)
        var = ((v - mean) ** 2).mean(axis=(0, 2, 3), keepdims=True)
        return (v - mean) / jnp.sqrt(var + EPS) * g.reshape(1, -1, 1, 1) \
            + b.reshape(1, -1, 1, 1)

    def conv(v, wgt, b, pad_h):
        y = jax.lax.conv_general_dilated(
            v, wgt, window_strides=(1, 1), padding=((pad_h, pad_h), (0, 0)),
            dimension_numbers=('NCHW', 'OIHW', 'NCHW'),
            precision=jax.lax.Precision.HIGHEST)
        return y + b.reshape(1, -1, 1, 1)

    y = conv(bn(x, g1, be1), w1, b1, 1)
    y = conv(jnp.maximum(bn(y, g2, be2), 0.0), w2, b2, 1)
    y = bn(y, g3, be3)
    return y + conv(x, wup, bup, 0)


if __name__ == "__main__":
    # res_block2d(inp=4, out=8, kernel=3)  => last_kernel = 1
    N, Cin, Cout, H, W = 2, 4, 8, 16, 16
    ks = jax.random.split(jax.random.PRNGKey(0), 13)

    x = jax.random.normal(ks[0], (N, Cin, H, W), jnp.float32)
    w1 = 0.1 * jax.random.normal(ks[1], (Cout, Cin, 3, 1), jnp.float32)
    b1 = 0.1 * jax.random.normal(ks[2], (Cout,), jnp.float32)
    w2 = 0.1 * jax.random.normal(ks[3], (Cout, Cout, 3, 1), jnp.float32)
    b2 = 0.1 * jax.random.normal(ks[4], (Cout,), jnp.float32)
    wup = 0.1 * jax.random.normal(ks[5], (Cout, Cin, 1, 1), jnp.float32)
    bup = 0.1 * jax.random.normal(ks[6], (Cout,), jnp.float32)
    g1 = 1.0 + 0.1 * jax.random.normal(ks[7], (Cin,), jnp.float32)
    be1 = 0.1 * jax.random.normal(ks[8], (Cin,), jnp.float32)
    g2 = 1.0 + 0.1 * jax.random.normal(ks[9], (Cout,), jnp.float32)
    be2 = 0.1 * jax.random.normal(ks[10], (Cout,), jnp.float32)
    g3 = 1.0 + 0.1 * jax.random.normal(ks[11], (Cout,), jnp.float32)
    be3 = 0.1 * jax.random.normal(ks[12], (Cout,), jnp.float32)
    params = (w1, b1, w2, b2, wup, bup, g1, be1, g2, be2, g3, be3)

    out = jax.block_until_ready(res_block2d_forward(x, params))
    assert out.shape == (N, Cout, H, W), out.shape

    ref = ref_forward(x, params)
    max_err = float(jnp.max(jnp.abs(out - ref)))
    # bf16 MXU operands + bf16 intermediate activations vs the exact-f32
    # reference, with two BatchNorm normalizations amplifying the drift.
    if max_err > 7.5e-2:
        raise AssertionError(f"kernel/reference mismatch, max abs err = {max_err}")

    print("KERNEL_OK")
</pallas_src>

<mosaic_0001>
module attributes {stable_mosaic.version = 11 : i64} {
  func.func @_bn_residual_kernel(%arg0: i32, %arg1: memref<1x8x256xbf16, #tpu.memory_space<vmem>>, %arg2: memref<1x4x256xf32, #tpu.memory_space<vmem>>, %arg3: memref<8x1xf32, #tpu.memory_space<vmem>>, %arg4: memref<8x1xf32, #tpu.memory_space<vmem>>, %arg5: memref<8x4xbf16, #tpu.memory_space<vmem>>, %arg6: memref<8x1xf32, #tpu.memory_space<vmem>>, %arg7: memref<1x8x256xf32, #tpu.memory_space<vmem>>) attributes {dimension_semantics = [#tpu.dimension_semantics<parallel>], iteration_bounds = array<i64: 2>, scalar_prefetch = 0 : i64, scratch_operands = 0 : i64, tpu.core_type = #tpu.core_type<tc>, window_params = [{transform_indices = @transform_0, window_bounds = array<i64: 1, 8, 256>}, {transform_indices = @transform_1, window_bounds = array<i64: 1, 4, 256>}, {pipeline_mode = #tpu.pipeline_mode<synchronous>, transform_indices = @transform_2, window_bounds = array<i64: 8, 1>}, {pipeline_mode = #tpu.pipeline_mode<synchronous>, transform_indices = @transform_3, window_bounds = array<i64: 8, 1>}, {pipeline_mode = #tpu.pipeline_mode<synchronous>, transform_indices = @transform_4, window_bounds = array<i64: 8, 4>}, {pipeline_mode = #tpu.pipeline_mode<synchronous>, transform_indices = @transform_5, window_bounds = array<i64: 8, 1>}, {transform_indices = @transform_6, window_bounds = array<i64: 1, 8, 256>}]} {
    %c0 = arith.constant 0 : index
    %c0_0 = arith.constant 0 : index
    %0 = vector.load %arg3[%c0, %c0_0] : memref<8x1xf32, #tpu.memory_space<vmem>>, vector<8x1xf32>
    %c0_1 = arith.constant 0 : index
    %c0_2 = arith.constant 0 : index
    %1 = vector.load %arg4[%c0_1, %c0_2] : memref<8x1xf32, #tpu.memory_space<vmem>>, vector<8x1xf32>
    %c0_3 = arith.constant 0 : index
    %c0_4 = arith.constant 0 : index
    %2 = vector.load %arg5[%c0_3, %c0_4] : memref<8x4xbf16, #tpu.memory_space<vmem>>, vector<8x4xbf16>
    %c0_5 = arith.constant 0 : index
    %c0_6 = arith.constant 0 : index
    %3 = vector.load %arg6[%c0_5, %c0_6] : memref<8x1xf32, #tpu.memory_space<vmem>>, vector<8x1xf32>
    %c0_7 = arith.constant 0 : index
    %c0_8 = arith.constant 0 : index
    %c0_9 = arith.constant 0 : index
    %4 = vector.load %arg2[%c0_7, %c0_8, %c0_9] : memref<1x4x256xf32, #tpu.memory_space<vmem>>, vector<1x4x256xf32>
    %5 = vector.shape_cast %4 : vector<1x4x256xf32> to vector<4x256xf32>
    %6 = arith.truncf %5 : vector<4x256xf32> to vector<4x256xbf16>
    %cst = arith.constant dense<0.000000e+00> : vector<8x256xf32>
    %7 = tpu.matmul %2, %6, %cst {dimension_numbers = #tpu.dot_dimension_numbers<[1], [0], [0], [1], [0, 0, 1, 1], [], []>} : vector<8x4xbf16>, vector<4x256xbf16>, vector<8x256xf32> -> vector<8x256xf32>
    %8 = vector.broadcast %3 : vector<8x1xf32> to vector<8x256xf32>
    %9 = arith.addf %7, %8 : vector<8x256xf32>
    %c0_10 = arith.constant 0 : index
    %c0_11 = arith.constant 0 : index
    %c0_12 = arith.constant 0 : index
    %10 = vector.load %arg1[%c0_10, %c0_11, %c0_12] : memref<1x8x256xbf16, #tpu.memory_space<vmem>>, vector<1x8x256xbf16>
    %11 = vector.shape_cast %10 : vector<1x8x256xbf16> to vector<8x256xbf16>
    %12 = arith.extf %11 : vector<8x256xbf16> to vector<8x256xf32>
    %13 = vector.broadcast %0 : vector<8x1xf32> to vector<8x256xf32>
    %14 = arith.mulf %12, %13 : vector<8x256xf32>
    %15 = vector.broadcast %1 : vector<8x1xf32> to vector<8x256xf32>
    %16 = arith.addf %14, %15 : vector<8x256xf32>
    %17 = arith.addf %16, %9 : vector<8x256xf32>
    %c0_13 = arith.constant 0 : index
    %c0_14 = arith.constant 0 : index
    %c0_15 = arith.constant 0 : index
    %18 = vector.load %arg7[%c0_13, %c0_14, %c0_15] : memref<1x8x256xf32, #tpu.memory_space<vmem>>, vector<1x8x256xf32>
    %19 = vector.shape_cast %18 : vector<1x8x256xf32> to vector<8x256xf32>
    %20 = vector.shape_cast %17 : vector<8x256xf32> to vector<1x8x256xf32>
    tpu.vector_store %arg7[%c0_13, %c0_14, %c0_15], %20 {strides = array<i32>} : memref<1x8x256xf32, #tpu.memory_space<vmem>>, vector<1x8x256xf32>,
    return
  }
  func.func @transform_0(%arg0: i32) -> (i32, i32, i32) {
    %c0_i32 = arith.constant 0 : i32
    %c0_i32_0 = arith.constant 0 : i32
    %c0_i32_1 = arith.constant 0 : i32
    return %arg0, %c0_i32, %c0_i32_0 : i32, i32, i32
  }
  func.func @transform_1(%arg0: i32) -> (i32, i32, i32) {
    %c0_i32 = arith.constant 0 : i32
    %c0_i32_0 = arith.constant 0 : i32
    %c0_i32_1 = arith.constant 0 : i32
    return %arg0, %c0_i32, %c0_i32_0 : i32, i32, i32
  }
  func.func @transform_2(%arg0: i32) -> (i32, i32) {
    %c0_i32 = arith.constant 0 : i32
    %c0_i32_0 = arith.constant 0 : i32
    %c0_i32_1 = arith.constant 0 : i32
    return %c0_i32, %c0_i32_0 : i32, i32
  }
  func.func @transform_3(%arg0: i32) -> (i32, i32) {
    %c0_i32 = arith.constant 0 : i32
    %c0_i32_0 = arith.constant 0 : i32
    %c0_i32_1 = arith.constant 0 : i32
    return %c0_i32, %c0_i32_0 : i32, i32
  }
  func.func @transform_4(%arg0: i32) -> (i32, i32) {
    %c0_i32 = arith.constant 0 : i32
    %c0_i32_0 = arith.constant 0 : i32
    %c0_i32_1 = arith.constant 0 : i32
    return %c0_i32, %c0_i32_0 : i32, i32
  }
  func.func @transform_5(%arg0: i32) -> (i32, i32) {
    %c0_i32 = arith.constant 0 : i32
    %c0_i32_0 = arith.constant 0 : i32
    %c0_i32_1 = arith.constant 0 : i32
    return %c0_i32, %c0_i32_0 : i32, i32
  }
  func.func @transform_6(%arg0: i32) -> (i32, i32, i32) {
    %c0_i32 = arith.constant 0 : i32
    %c0_i32_0 = arith.constant 0 : i32
    %c0_i32_1 = arith.constant 0 : i32
    return %arg0, %c0_i32, %c0_i32_0 : i32, i32, i32
  }
}

module attributes {stable_mosaic.version = 11 : i64} {
  func.func @_bn_conv3_kernel(%arg0: i32, %arg1: memref<1x8x256xbf16, #tpu.memory_space<vmem>>, %arg2: memref<8x1xf32, #tpu.memory_space<vmem>>, %arg3: memref<8x1xf32, #tpu.memory_space<vmem>>, %arg4: memref<3x8x8xbf16, #tpu.memory_space<vmem>>, %arg5: memref<1x256xf32, #tpu.memory_space<vmem>>, %arg6: memref<1x256xf32, #tpu.memory_space<vmem>>, %arg7: memref<1x8x256xbf16, #tpu.memory_space<vmem>>, %arg8: memref<1x8x128xf32, #tpu.memory_space<vmem>>, %arg9: memref<1x8x128xf32, #tpu.memory_space<vmem>>) attributes {dimension_semantics = [#tpu.dimension_semantics<parallel>], iteration_bounds = array<i64: 2>, scalar_prefetch = 0 : i64, scratch_operands = 0 : i64, tpu.core_type = #tpu.core_type<tc>, window_params = [{transform_indices = @transform_0, window_bounds = array<i64: 1, 8, 256>}, {pipeline_mode = #tpu.pipeline_mode<synchronous>, transform_indices = @transform_1, window_bounds = array<i64: 8, 1>}, {pipeline_mode = #tpu.pipeline_mode<synchronous>, transform_indices = @transform_2, window_bounds = array<i64: 8, 1>}, {pipeline_mode = #tpu.pipeline_mode<synchronous>, transform_indices = @transform_3, window_bounds = array<i64: 3, 8, 8>}, {pipeline_mode = #tpu.pipeline_mode<synchronous>, transform_indices = @transform_4, window_bounds = array<i64: 1, 256>}, {pipeline_mode = #tpu.pipeline_mode<synchronous>, transform_indices = @transform_5, window_bounds = array<i64: 1, 256>}, {transform_indices = @transform_6, window_bounds = array<i64: 1, 8, 256>}, {transform_indices = @transform_7, window_bounds = array<i64: 1, 8, 128>}, {transform_indices = @transform_8, window_bounds = array<i64: 1, 8, 128>}]} {
    %c0 = arith.constant 0 : index
    %c0_0 = arith.constant 0 : index
    %0 = vector.load %arg2[%c0, %c0_0] : memref<8x1xf32, #tpu.memory_space<vmem>>, vector<8x1xf32>
    %c0_1 = arith.constant 0 : index
    %c0_2 = arith.constant 0 : index
    %1 = vector.load %arg3[%c0_1, %c0_2] : memref<8x1xf32, #tpu.memory_space<vmem>>, vector<8x1xf32>
    %c0_3 = arith.constant 0 : index
    %c0_4 = arith.constant 0 : index
    %2 = vector.load %arg5[%c0_3, %c0_4] : memref<1x256xf32, #tpu.memory_space<vmem>>, vector<1x256xf32>
    %c0_5 = arith.constant 0 : index
    %c0_6 = arith.constant 0 : index
    %3 = vector.load %arg6[%c0_5, %c0_6] : memref<1x256xf32, #tpu.memory_space<vmem>>, vector<1x256xf32>
    %c0_7 = arith.constant 0 : index
    %c0_8 = arith.constant 0 : index
    %c0_9 = arith.constant 0 : index
    %4 = vector.load %arg4[%c0_7, %c0_8, %c0_9] : memref<3x8x8xbf16, #tpu.memory_space<vmem>>, vector<1x8x8xbf16>
    %5 = vector.shape_cast %4 : vector<1x8x8xbf16> to vector<8x8xbf16>
    %c1 = arith.constant 1 : index
    %c0_10 = arith.constant 0 : index
    %c0_11 = arith.constant 0 : index
    %6 = vector.load %arg4[%c1, %c0_10, %c0_11] : memref<3x8x8xbf16, #tpu.memory_space<vmem>>, vector<1x8x8xbf16>
    %7 = vector.shape_cast %6 : vector<1x8x8xbf16> to vector<8x8xbf16>
    %c2 = arith.constant 2 : index
    %c0_12 = arith.constant 0 : index
    %c0_13 = arith.constant 0 : index
    %8 = vector.load %arg4[%c2, %c0_12, %c0_13] : memref<3x8x8xbf16, #tpu.memory_space<vmem>>, vector<1x8x8xbf16>
    %9 = vector.shape_cast %8 : vector<1x8x8xbf16> to vector<8x8xbf16>
    %cst = arith.constant 0.000000e+00 : f32
    %10 = vector.broadcast %cst : f32 to vector<8x128xf32>
    %cst_14 = arith.constant 0.000000e+00 : f32
    %11 = vector.broadcast %cst_14 : f32 to vector<8x128xf32>
    %c0_15 = arith.constant 0 : index
    %c0_16 = arith.constant 0 : index
    %c0_17 = arith.constant 0 : index
    %12 = vector.load %arg1[%c0_15, %c0_16, %c0_17] : memref<1x8x256xbf16, #tpu.memory_space<vmem>>, vector<1x8x256xbf16>
    %13 = vector.shape_cast %12 : vector<1x8x256xbf16> to vector<8x256xbf16>
    %14 = arith.extf %13 : vector<8x256xbf16> to vector<8x256xf32>
    %15 = vector.broadcast %0 : vector<8x1xf32> to vector<8x256xf32>
    %16 = arith.mulf %14, %15 : vector<8x256xf32>
    %17 = vector.broadcast %1 : vector<8x1xf32> to vector<8x256xf32>
    %18 = arith.addf %16, %17 : vector<8x256xf32>
    %cst_18 = arith.constant 0.000000e+00 : f32
    %19 = vector.broadcast %cst_18 : f32 to vector<8x256xf32>
    %20 = arith.maximumf %18, %19 : vector<8x256xf32>
    %c16_i32 = arith.constant 16 : i32
    %21 = tpu.dynamic_rotate %20 by %c16_i32 dim 1 : vector<8x256xf32>, i32 -> vector<8x256xf32>
    %22 = vector.broadcast %2 : vector<1x256xf32> to vector<8x256xf32>
    %23 = arith.mulf %21, %22 : vector<8x256xf32>
    %c240_i32 = arith.constant 240 : i32
    %24 = tpu.dynamic_rotate %20 by %c240_i32 dim 1 : vector<8x256xf32>, i32 -> vector<8x256xf32>
    %25 = vector.broadcast %3 : vector<1x256xf32> to vector<8x256xf32>
    %26 = arith.mulf %24, %25 : vector<8x256xf32>
    %27 = arith.truncf %20 : vector<8x256xf32> to vector<8x256xbf16>
    %cst_19 = arith.constant dense<0.000000e+00> : vector<8x256xf32>
    %28 = tpu.matmul %7, %27, %cst_19 {dimension_numbers = #tpu.dot_dimension_numbers<[1], [0], [0], [1], [0, 0, 1, 1], [], []>} : vector<8x8xbf16>, vector<8x256xbf16>, vector<8x256xf32> -> vector<8x256xf32>
    %29 = arith.truncf %23 : vector<8x256xf32> to vector<8x256xbf16>
    %cst_20 = arith.constant dense<0.000000e+00> : vector<8x256xf32>
    %30 = tpu.matmul %5, %29, %cst_20 {dimension_numbers = #tpu.dot_dimension_numbers<[1], [0], [0], [1], [0, 0, 1, 1], [], []>} : vector<8x8xbf16>, vector<8x256xbf16>, vector<8x256xf32> -> vector<8x256xf32>
    %31 = arith.addf %28, %30 : vector<8x256xf32>
    %32 = arith.truncf %26 : vector<8x256xf32> to vector<8x256xbf16>
    %cst_21 = arith.constant dense<0.000000e+00> : vector<8x256xf32>
    %33 = tpu.matmul %9, %32, %cst_21 {dimension_numbers = #tpu.dot_dimension_numbers<[1], [0], [0], [1], [0, 0, 1, 1], [], []>} : vector<8x8xbf16>, vector<8x256xbf16>, vector<8x256xf32> -> vector<8x256xf32>
    %34 = arith.addf %31, %33 : vector<8x256xf32>
    %35 = arith.truncf %34 : vector<8x256xf32> to vector<8x256xbf16>
    %c0_22 = arith.constant 0 : index
    %c0_23 = arith.constant 0 : index
    %c0_24 = arith.constant 0 : index
    %36 = vector.load %arg7[%c0_22, %c0_23, %c0_24] : memref<1x8x256xbf16, #tpu.memory_space<vmem>>, vector<1x8x256xbf16>
    %37 = vector.shape_cast %36 : vector<1x8x256xbf16> to vector<8x256xbf16>
    %38 = vector.shape_cast %35 : vector<8x256xbf16> to vector<1x8x256xbf16>
    tpu.vector_store %arg7[%c0_22, %c0_23, %c0_24], %38 {strides = array<i32>} : memref<1x8x256xbf16, #tpu.memory_space<vmem>>, vector<1x8x256xbf16>,
    %39 = vector.extract_strided_slice %34 {offsets = [0, 0], sizes = [8, 128], strides = [1, 1]} : vector<8x256xf32> to vector<8x128xf32>
    %40 = arith.addf %10, %39 : vector<8x128xf32>
    %41 = arith.mulf %39, %39 : vector<8x128xf32>
    %42 = arith.addf %11, %41 : vector<8x128xf32>
    %43 = vector.extract_strided_slice %34 {offsets = [0, 128], sizes = [8, 128], strides = [1, 1]} : vector<8x256xf32> to vector<8x128xf32>
    %44 = arith.addf %40, %43 : vector<8x128xf32>
    %45 = arith.mulf %43, %43 : vector<8x128xf32>
    %46 = arith.addf %42, %45 : vector<8x128xf32>
    %47 = vector.shape_cast %44 : vector<8x128xf32> to vector<1x8x128xf32>
    %c0_25 = arith.constant 0 : index
    %c0_26 = arith.constant 0 : index
    %c0_27 = arith.constant 0 : index
    %48 = vector.load %arg8[%c0_25, %c0_26, %c0_27] : memref<1x8x128xf32, #tpu.memory_space<vmem>>, vector<1x8x128xf32>
    tpu.vector_store %arg8[%c0_25, %c0_26, %c0_27], %47 {strides = array<i32>} : memref<1x8x128xf32, #tpu.memory_space<vmem>>, vector<1x8x128xf32>,
    %49 = vector.shape_cast %46 : vector<8x128xf32> to vector<1x8x128xf32>
    %c0_28 = arith.constant 0 : index
    %c0_29 = arith.constant 0 : index
    %c0_30 = arith.constant 0 : index
    %50 = vector.load %arg9[%c0_28, %c0_29, %c0_30] : memref<1x8x128xf32, #tpu.memory_space<vmem>>, vector<1x8x128xf32>
    tpu.vector_store %arg9[%c0_28, %c0_29, %c0_30], %49 {strides = array<i32>} : memref<1x8x128xf32, #tpu.memory_space<vmem>>, vector<1x8x128xf32>,
    return
  }
  func.func @transform_0(%arg0: i32) -> (i32, i32, i32) {
    %c0_i32 = arith.constant 0 : i32
    %c0_i32_0 = arith.constant 0 : i32
    %c0_i32_1 = arith.constant 0 : i32
    return %arg0, %c0_i32, %c0_i32_0 : i32, i32, i32
  }
  func.func @transform_1(%arg0: i32) -> (i32, i32) {
    %c0_i32 = arith.constant 0 : i32
    %c0_i32_0 = arith.constant 0 : i32
    %c0_i32_1 = arith.constant 0 : i32
    return %c0_i32, %c0_i32_0 : i32, i32
  }
  func.func @transform_2(%arg0: i32) -> (i32, i32) {
    %c0_i32 = arith.constant 0 : i32
    %c0_i32_0 = arith.constant 0 : i32
    %c0_i32_1 = arith.constant 0 : i32
    return %c0_i32, %c0_i32_0 : i32, i32
  }
  func.func @transform_3(%arg0: i32) -> (i32, i32, i32) {
    %c0_i32 = arith.constant 0 : i32
    %c0_i32_0 = arith.constant 0 : i32
    %c0_i32_1 = arith.constant 0 : i32
    %c0_i32_2 = arith.constant 0 : i32
    return %c0_i32, %c0_i32_0, %c0_i32_1 : i32, i32, i32
  }
  func.func @transform_4(%arg0: i32) -> (i32, i32) {
    %c0_i32 = arith.constant 0 : i32
    %c0_i32_0 = arith.constant 0 : i32
    %c0_i32_1 = arith.constant 0 : i32
    return %c0_i32, %c0_i32_0 : i32, i32
  }
  func.func @transform_5(%arg0: i32) -> (i32, i32) {
    %c0_i32 = arith.constant 0 : i32
    %c0_i32_0 = arith.constant 0 : i32
    %c0_i32_1 = arith.constant 0 : i32
    return %c0_i32, %c0_i32_0 : i32, i32
  }
  func.func @transform_6(%arg0: i32) -> (i32, i32, i32) {
    %c0_i32 = arith.constant 0 : i32
    %c0_i32_0 = arith.constant 0 : i32
    %c0_i32_1 = arith.constant 0 : i32
    return %arg0, %c0_i32, %c0_i32_0 : i32, i32, i32
  }
  func.func @transform_7(%arg0: i32) -> (i32, i32, i32) {
    %c0_i32 = arith.constant 0 : i32
    %c0_i32_0 = arith.constant 0 : i32
    %c0_i32_1 = arith.constant 0 : i32
    return %arg0, %c0_i32, %c0_i32_0 : i32, i32, i32
  }
  func.func @transform_8(%arg0: i32) -> (i32, i32, i32) {
    %c0_i32 = arith.constant 0 : i32
    %c0_i32_0 = arith.constant 0 : i32
    %c0_i32_1 = arith.constant 0 : i32
    return %arg0, %c0_i32, %c0_i32_0 : i32, i32, i32
  }
}

module attributes {stable_mosaic.version = 11 : i64} {
  func.func @_bn_conv3_kernel(%arg0: i32, %arg1: memref<1x4x256xf32, #tpu.memory_space<vmem>>, %arg2: memref<4x1xf32, #tpu.memory_space<vmem>>, %arg3: memref<4x1xf32, #tpu.memory_space<vmem>>, %arg4: memref<3x8x4xbf16, #tpu.memory_space<vmem>>, %arg5: memref<1x256xf32, #tpu.memory_space<vmem>>, %arg6: memref<1x256xf32, #tpu.memory_space<vmem>>, %arg7: memref<1x8x256xbf16, #tpu.memory_space<vmem>>, %arg8: memref<1x8x128xf32, #tpu.memory_space<vmem>>, %arg9: memref<1x8x128xf32, #tpu.memory_space<vmem>>) attributes {dimension_semantics = [#tpu.dimension_semantics<parallel>], iteration_bounds = array<i64: 2>, scalar_prefetch = 0 : i64, scratch_operands = 0 : i64, tpu.core_type = #tpu.core_type<tc>, window_params = [{transform_indices = @transform_0, window_bounds = array<i64: 1, 4, 256>}, {pipeline_mode = #tpu.pipeline_mode<synchronous>, transform_indices = @transform_1, window_bounds = array<i64: 4, 1>}, {pipeline_mode = #tpu.pipeline_mode<synchronous>, transform_indices = @transform_2, window_bounds = array<i64: 4, 1>}, {pipeline_mode = #tpu.pipeline_mode<synchronous>, transform_indices = @transform_3, window_bounds = array<i64: 3, 8, 4>}, {pipeline_mode = #tpu.pipeline_mode<synchronous>, transform_indices = @transform_4, window_bounds = array<i64: 1, 256>}, {pipeline_mode = #tpu.pipeline_mode<synchronous>, transform_indices = @transform_5, window_bounds = array<i64: 1, 256>}, {transform_indices = @transform_6, window_bounds = array<i64: 1, 8, 256>}, {transform_indices = @transform_7, window_bounds = array<i64: 1, 8, 128>}, {transform_indices = @transform_8, window_bounds = array<i64: 1, 8, 128>}]} {
    %c0 = arith.constant 0 : index
    %c0_0 = arith.constant 0 : index
    %0 = vector.load %arg2[%c0, %c0_0] : memref<4x1xf32, #tpu.memory_space<vmem>>, vector<4x1xf32>
    %c0_1 = arith.constant 0 : index
    %c0_2 = arith.constant 0 : index
    %1 = vector.load %arg3[%c0_1, %c0_2] : memref<4x1xf32, #tpu.memory_space<vmem>>, vector<4x1xf32>
    %c0_3 = arith.constant 0 : index
    %c0_4 = arith.constant 0 : index
    %2 = vector.load %arg5[%c0_3, %c0_4] : memref<1x256xf32, #tpu.memory_space<vmem>>, vector<1x256xf32>
    %c0_5 = arith.constant 0 : index
    %c0_6 = arith.constant 0 : index
    %3 = vector.load %arg6[%c0_5, %c0_6] : memref<1x256xf32, #tpu.memory_space<vmem>>, vector<1x256xf32>
    %c0_7 = arith.constant 0 : index
    %c0_8 = arith.constant 0 : index
    %c0_9 = arith.constant 0 : index
    %4 = vector.load %arg4[%c0_7, %c0_8, %c0_9] : memref<3x8x4xbf16, #tpu.memory_space<vmem>>, vector<1x8x4xbf16>
    %5 = vector.shape_cast %4 : vector<1x8x4xbf16> to vector<8x4xbf16>
    %c1 = arith.constant 1 : index
    %c0_10 = arith.constant 0 : index
    %c0_11 = arith.constant 0 : index
    %6 = vector.load %arg4[%c1, %c0_10, %c0_11] : memref<3x8x4xbf16, #tpu.memory_space<vmem>>, vector<1x8x4xbf16>
    %7 = vector.shape_cast %6 : vector<1x8x4xbf16> to vector<8x4xbf16>
    %c2 = arith.constant 2 : index
    %c0_12 = arith.constant 0 : index
    %c0_13 = arith.constant 0 : index
    %8 = vector.load %arg4[%c2, %c0_12, %c0_13] : memref<3x8x4xbf16, #tpu.memory_space<vmem>>, vector<1x8x4xbf16>
    %9 = vector.shape_cast %8 : vector<1x8x4xbf16> to vector<8x4xbf16>
    %cst = arith.constant 0.000000e+00 : f32
    %10 = vector.broadcast %cst : f32 to vector<8x128xf32>
    %cst_14 = arith.constant 0.000000e+00 : f32
    %11 = vector.broadcast %cst_14 : f32 to vector<8x128xf32>
    %c0_15 = arith.constant 0 : index
    %c0_16 = arith.constant 0 : index
    %c0_17 = arith.constant 0 : index
    %12 = vector.load %arg1[%c0_15, %c0_16, %c0_17] : memref<1x4x256xf32, #tpu.memory_space<vmem>>, vector<1x4x256xf32>
    %13 = vector.shape_cast %12 : vector<1x4x256xf32> to vector<4x256xf32>
    %14 = vector.broadcast %0 : vector<4x1xf32> to vector<4x256xf32>
    %15 = arith.mulf %13, %14 : vector<4x256xf32>
    %16 = vector.broadcast %1 : vector<4x1xf32> to vector<4x256xf32>
    %17 = arith.addf %15, %16 : vector<4x256xf32>
    %c16_i32 = arith.constant 16 : i32
    %18 = tpu.dynamic_rotate %17 by %c16_i32 dim 1 : vector<4x256xf32>, i32 -> vector<4x256xf32>
    %19 = vector.broadcast %2 : vector<1x256xf32> to vector<4x256xf32>
    %20 = arith.mulf %18, %19 : vector<4x256xf32>
    %c240_i32 = arith.constant 240 : i32
    %21 = tpu.dynamic_rotate %17 by %c240_i32 dim 1 : vector<4x256xf32>, i32 -> vector<4x256xf32>
    %22 = vector.broadcast %3 : vector<1x256xf32> to vector<4x256xf32>
    %23 = arith.mulf %21, %22 : vector<4x256xf32>
    %24 = arith.truncf %17 : vector<4x256xf32> to vector<4x256xbf16>
    %cst_18 = arith.constant dense<0.000000e+00> : vector<8x256xf32>
    %25 = tpu.matmul %7, %24, %cst_18 {dimension_numbers = #tpu.dot_dimension_numbers<[1], [0], [0], [1], [0, 0, 1, 1], [], []>} : vector<8x4xbf16>, vector<4x256xbf16>, vector<8x256xf32> -> vector<8x256xf32>
    %26 = arith.truncf %20 : vector<4x256xf32> to vector<4x256xbf16>
    %cst_19 = arith.constant dense<0.000000e+00> : vector<8x256xf32>
    %27 = tpu.matmul %5, %26, %cst_19 {dimension_numbers = #tpu.dot_dimension_numbers<[1], [0], [0], [1], [0, 0, 1, 1], [], []>} : vector<8x4xbf16>, vector<4x256xbf16>, vector<8x256xf32> -> vector<8x256xf32>
    %28 = arith.addf %25, %27 : vector<8x256xf32>
    %29 = arith.truncf %23 : vector<4x256xf32> to vector<4x256xbf16>
    %cst_20 = arith.constant dense<0.000000e+00> : vector<8x256xf32>
    %30 = tpu.matmul %9, %29, %cst_20 {dimension_numbers = #tpu.dot_dimension_numbers<[1], [0], [0], [1], [0, 0, 1, 1], [], []>} : vector<8x4xbf16>, vector<4x256xbf16>, vector<8x256xf32> -> vector<8x256xf32>
    %31 = arith.addf %28, %30 : vector<8x256xf32>
    %32 = arith.truncf %31 : vector<8x256xf32> to vector<8x256xbf16>
    %c0_21 = arith.constant 0 : index
    %c0_22 = arith.constant 0 : index
    %c0_23 = arith.constant 0 : index
    %33 = vector.load %arg7[%c0_21, %c0_22, %c0_23] : memref<1x8x256xbf16, #tpu.memory_space<vmem>>, vector<1x8x256xbf16>
    %34 = vector.shape_cast %33 : vector<1x8x256xbf16> to vector<8x256xbf16>
    %35 = vector.shape_cast %32 : vector<8x256xbf16> to vector<1x8x256xbf16>
    tpu.vector_store %arg7[%c0_21, %c0_22, %c0_23], %35 {strides = array<i32>} : memref<1x8x256xbf16, #tpu.memory_space<vmem>>, vector<1x8x256xbf16>,
    %36 = vector.extract_strided_slice %31 {offsets = [0, 0], sizes = [8, 128], strides = [1, 1]} : vector<8x256xf32> to vector<8x128xf32>
    %37 = arith.addf %10, %36 : vector<8x128xf32>
    %38 = arith.mulf %36, %36 : vector<8x128xf32>
    %39 = arith.addf %11, %38 : vector<8x128xf32>
    %40 = vector.extract_strided_slice %31 {offsets = [0, 128], sizes = [8, 128], strides = [1, 1]} : vector<8x256xf32> to vector<8x128xf32>
    %41 = arith.addf %37, %40 : vector<8x128xf32>
    %42 = arith.mulf %40, %40 : vector<8x128xf32>
    %43 = arith.addf %39, %42 : vector<8x128xf32>
    %44 = vector.shape_cast %41 : vector<8x128xf32> to vector<1x8x128xf32>
    %c0_24 = arith.constant 0 : index
    %c0_25 = arith.constant 0 : index
    %c0_26 = arith.constant 0 : index
    %45 = vector.load %arg8[%c0_24, %c0_25, %c0_26] : memref<1x8x128xf32, #tpu.memory_space<vmem>>, vector<1x8x128xf32>
    tpu.vector_store %arg8[%c0_24, %c0_25, %c0_26], %44 {strides = array<i32>} : memref<1x8x128xf32, #tpu.memory_space<vmem>>, vector<1x8x128xf32>,
    %46 = vector.shape_cast %43 : vector<8x128xf32> to vector<1x8x128xf32>
    %c0_27 = arith.constant 0 : index
    %c0_28 = arith.constant 0 : index
    %c0_29 = arith.constant 0 : index
    %47 = vector.load %arg9[%c0_27, %c0_28, %c0_29] : memref<1x8x128xf32, #tpu.memory_space<vmem>>, vector<1x8x128xf32>
    tpu.vector_store %arg9[%c0_27, %c0_28, %c0_29], %46 {strides = array<i32>} : memref<1x8x128xf32, #tpu.memory_space<vmem>>, vector<1x8x128xf32>,
    return
  }
  func.func @transform_0(%arg0: i32) -> (i32, i32, i32) {
    %c0_i32 = arith.constant 0 : i32
    %c0_i32_0 = arith.constant 0 : i32
    %c0_i32_1 = arith.constant 0 : i32
    return %arg0, %c0_i32, %c0_i32_0 : i32, i32, i32
  }
  func.func @transform_1(%arg0: i32) -> (i32, i32) {
    %c0_i32 = arith.constant 0 : i32
    %c0_i32_0 = arith.constant 0 : i32
    %c0_i32_1 = arith.constant 0 : i32
    return %c0_i32, %c0_i32_0 : i32, i32
  }
  func.func @transform_2(%arg0: i32) -> (i32, i32) {
    %c0_i32 = arith.constant 0 : i32
    %c0_i32_0 = arith.constant 0 : i32
    %c0_i32_1 = arith.constant 0 : i32
    return %c0_i32, %c0_i32_0 : i32, i32
  }
  func.func @transform_3(%arg0: i32) -> (i32, i32, i32) {
    %c0_i32 = arith.constant 0 : i32
    %c0_i32_0 = arith.constant 0 : i32
    %c0_i32_1 = arith.constant 0 : i32
    %c0_i32_2 = arith.constant 0 : i32
    return %c0_i32, %c0_i32_0, %c0_i32_1 : i32, i32, i32
  }
  func.func @transform_4(%arg0: i32) -> (i32, i32) {
    %c0_i32 = arith.constant 0 : i32
    %c0_i32_0 = arith.constant 0 : i32
    %c0_i32_1 = arith.constant 0 : i32
    return %c0_i32, %c0_i32_0 : i32, i32
  }
  func.func @transform_5(%arg0: i32) -> (i32, i32) {
    %c0_i32 = arith.constant 0 : i32
    %c0_i32_0 = arith.constant 0 : i32
    %c0_i32_1 = arith.constant 0 : i32
    return %c0_i32, %c0_i32_0 : i32, i32
  }
  func.func @transform_6(%arg0: i32) -> (i32, i32, i32) {
    %c0_i32 = arith.constant 0 : i32
    %c0_i32_0 = arith.constant 0 : i32
    %c0_i32_1 = arith.constant 0 : i32
    return %arg0, %c0_i32, %c0_i32_0 : i32, i32, i32
  }
  func.func @transform_7(%arg0: i32) -> (i32, i32, i32) {
    %c0_i32 = arith.constant 0 : i32
    %c0_i32_0 = arith.constant 0 : i32
    %c0_i32_1 = arith.constant 0 : i32
    return %arg0, %c0_i32, %c0_i32_0 : i32, i32, i32
  }
  func.func @transform_8(%arg0: i32) -> (i32, i32, i32) {
    %c0_i32 = arith.constant 0 : i32
    %c0_i32_0 = arith.constant 0 : i32
    %c0_i32_1 = arith.constant 0 : i32
    return %arg0, %c0_i32, %c0_i32_0 : i32, i32, i32
  }
}

</mosaic_0001>

<llo_original>
// kernel: res_block2d_forward.5
$region0: #{res_block2d_forward.5}
  #allocation0 [shape = 'u32[]', space=smem, size = 0x4, offset = 0x4, fixed_abs, tag = 'smem constant byte address 0x4 - core index']
  #allocation1 [shape = 'u32[144,128]{1,0:T(1,128)}', space=vmem, size = 0x12000, scoped, tag = 'internal scratch']
  %s0 = inlined_call_operand.vmem [shape: bf16[2,8,256], index: 0, kind: input, shape index: {}]
  %s1 = inlined_call_operand.vmem [shape: f32[2,4,256], index: 1, kind: input, shape index: {}]
  %s2 = inlined_call_operand.vmem [shape: f32[8,1], index: 2, kind: input, shape index: {}]
  %s3 = inlined_call_operand.vmem [shape: f32[8,1], index: 3, kind: input, shape index: {}]
  %s4 = inlined_call_operand.vmem [shape: bf16[8,4], index: 4, kind: input, shape index: {}]
  %s5 = inlined_call_operand.vmem [shape: f32[8,1], index: 5, kind: input, shape index: {}]
  %s6 = inlined_call_operand.vmem [shape: f32[2,8,256], index: 6, kind: output, shape index: {}]
  %s7 = sld [smem:[#allocation0]]
  $region57: #{res_block2d_forward.5} parent=0
    _
  %s9 = ssub.s32 1, %s7
  %s10 = scalar_select 0, %s9, %s7
  loop: start=0, step=1, limit=4
  $region2: #{res_block2d_forward.5} parent=0 // loop_pre_header
    _
  $region3: #{res_block2d_forward.5} parent=0 // loop_header
    %s12 = sphi 0, %s16
    %p13 = scmp.ge.s32.totalorder %s12, 4
    %s22 = sphi 0, %s24
    %s25 = sphi 0, %s22
    %s26 = sphi 0, %s25
    %s42 = sphi 0, %s26
    %s48 = sphi 0, %s50
    %s51 = sphi 0, %s48
    %s52 = sphi 0, %s51
    %s68 = sphi 0, %s52
    %s72 = sphi 0, %s72
    %s74 = sphi 0, %s72
    %s75 = sphi 0, %s74
    %s89 = sphi 0, %s75
    %s93 = sphi 0, %s93
    %s95 = sphi 0, %s93
    %s96 = sphi 0, %s95
    %s110 = sphi 0, %s96
    %s114 = sphi 0, %s114
    %s116 = sphi 0, %s114
    %s117 = sphi 0, %s116
    %s131 = sphi 0, %s117
    %s135 = sphi 0, %s135
    %s137 = sphi 0, %s135
    %s138 = sphi 0, %s137
    %s152 = sphi 0, %s138
    %s158 = sphi 0, %s160
    %s161 = sphi 0, %s158
    %s162 = sphi 0, %s161
    %s178 = sphi 0, %s162
  $region4: #{res_block2d_forward.5} parent=0 // loop_header_branch
    %15 = sbr.rel (%p13) target = $region8
  $region5: #{res_block2d_forward.5} parent=0 // loop_body
    %s17 = ssub.s32 %s12, 1
    %s18 = ssub.s32 %s12, 2
    %s19 = sadd.s32 %s12, 1
    %s20 = ssub.s32 %s12, %s19
    %p21 = scmp.eq.s32.totalorder %s20, 0
    %s23 = sadd.s32 %s22, 1
    %s24 = scalar_select %p21, %s22, %s23
    %p27 = pneg %p21
    %p28 = scmp.eq.s32.totalorder %s12, 1
    %p29 = por %p27, %p28
    %p30 = scmp.ne.s32.totalorder %s22, %s25
    %p31 = scmp.eq.s32.totalorder %s12, 0
    %p32 = por %p30, %p31
    %p33 = scmp.ne.s32.totalorder %s22, %s25
    %p34 = scmp.eq.s32.totalorder %s17, 1
    %p35 = por %p33, %p34
    %p36 = scmp.ne.s32.totalorder %s25, %s26
    %p37 = scmp.eq.s32.totalorder %s17, 0
    %p38 = por %p36, %p37
    %p39 = scmp.ne.s32.totalorder %s25, %s26
    %p40 = scmp.eq.s32.totalorder %s18, 1
    %p41 = por %p39, %p40
    %p43 = scmp.ne.s32.totalorder %s26, %s42
    %p44 = scmp.eq.s32.totalorder %s18, 0
    %p45 = por %p43, %p44
    %s46 = ssub.s32 %s12, %s19
    %p47 = scmp.eq.s32.totalorder %s46, 0
    %s49 = sadd.s32 %s48, 1
    %s50 = scalar_select %p47, %s48, %s49
    %p53 = pneg %p47
    %p54 = scmp.eq.s32.totalorder %s12, 1
    %p55 = por %p53, %p54
    %p56 = scmp.ne.s32.totalorder %s48, %s51
    %p57 = scmp.eq.s32.totalorder %s12, 0
    %p58 = por %p56, %p57
    %p59 = scmp.ne.s32.totalorder %s48, %s51
    %p60 = scmp.eq.s32.totalorder %s17, 1
    %p61 = por %p59, %p60
    %p62 = scmp.ne.s32.totalorder %s51, %s52
    %p63 = scmp.eq.s32.totalorder %s17, 0
    %p64 = por %p62, %p63
    %p65 = scmp.ne.s32.totalorder %s51, %s52
    %p66 = scmp.eq.s32.totalorder %s18, 1
    %p67 = por %p65, %p66
    %p69 = scmp.ne.s32.totalorder %s52, %s68
    %p70 = scmp.eq.s32.totalorder %s18, 0
    %p71 = por %p69, %p70
    %s73 = sadd.s32 %s72, 1
    %p76 = scmp.eq.s32.totalorder %s12, 1
    %p77 = scmp.ne.s32.totalorder %s72, %s74
    %p78 = scmp.eq.s32.totalorder %s12, 0
    %p79 = por %p77, %p78
    %p80 = scmp.ne.s32.totalorder %s72, %s74
    %p81 = scmp.eq.s32.totalorder %s17, 1
    %p82 = por %p80, %p81
    %p83 = scmp.ne.s32.totalorder %s74, %s75
    %p84 = scmp.eq.s32.totalorder %s17, 0
    %p85 = por %p83, %p84
    %p86 = scmp.ne.s32.totalorder %s74, %s75
    %p87 = scmp.eq.s32.totalorder %s18, 1
    %p88 = por %p86, %p87
    %p90 = scmp.ne.s32.totalorder %s75, %s89
    %p91 = scmp.eq.s32.totalorder %s18, 0
    %p92 = por %p90, %p91
    %s94 = sadd.s32 %s93, 1
    %p97 = scmp.eq.s32.totalorder %s12, 1
    %p98 = scmp.ne.s32.totalorder %s93, %s95
    %p99 = scmp.eq.s32.totalorder %s12, 0
    %p100 = por %p98, %p99
    %p101 = scmp.ne.s32.totalorder %s93, %s95
    %p102 = scmp.eq.s32.totalorder %s17, 1
    %p103 = por %p101, %p102
    %p104 = scmp.ne.s32.totalorder %s95, %s96
    %p105 = scmp.eq.s32.totalorder %s17, 0
    %p106 = por %p104, %p105
    %p107 = scmp.ne.s32.totalorder %s95, %s96
    %p108 = scmp.eq.s32.totalorder %s18, 1
    %p109 = por %p107, %p108
    %p111 = scmp.ne.s32.totalorder %s96, %s110
    %p112 = scmp.eq.s32.totalorder %s18, 0
    %p113 = por %p111, %p112
    %s115 = sadd.s32 %s114, 1
    %p118 = scmp.eq.s32.totalorder %s12, 1
    %p119 = scmp.ne.s32.totalorder %s114, %s116
    %p120 = scmp.eq.s32.totalorder %s12, 0
    %p121 = por %p119, %p120
    %p122 = scmp.ne.s32.totalorder %s114, %s116
    %p123 = scmp.eq.s32.totalorder %s17, 1
    %p124 = por %p122, %p123
    %p125 = scmp.ne.s32.totalorder %s116, %s117
    %p126 = scmp.eq.s32.totalorder %s17, 0
    %p127 = por %p125, %p126
    %p128 = scmp.ne.s32.totalorder %s116, %s117
    %p129 = scmp.eq.s32.totalorder %s18, 1
    %p130 = por %p128, %p129
    %p132 = scmp.ne.s32.totalorder %s117, %s131
    %p133 = scmp.eq.s32.totalorder %s18, 0
    %p134 = por %p132, %p133
    %s136 = sadd.s32 %s135, 1
    %p139 = scmp.eq.s32.totalorder %s12, 1
    %p140 = scmp.ne.s32.totalorder %s135, %s137
    %p141 = scmp.eq.s32.totalorder %s12, 0
    %p142 = por %p140, %p141
    %p143 = scmp.ne.s32.totalorder %s135, %s137
    %p144 = scmp.eq.s32.totalorder %s17, 1
    %p145 = por %p143, %p144
    %p146 = scmp.ne.s32.totalorder %s137, %s138
    %p147 = scmp.eq.s32.totalorder %s17, 0
    %p148 = por %p146, %p147
    %p149 = scmp.ne.s32.totalorder %s137, %s138
    %p150 = scmp.eq.s32.totalorder %s18, 1
    %p151 = por %p149, %p150
    %p153 = scmp.ne.s32.totalorder %s138, %s152
    %p154 = scmp.eq.s32.totalorder %s18, 0
    %p155 = por %p153, %p154
    %s156 = ssub.s32 %s12, %s19
    %p157 = scmp.eq.s32.totalorder %s156, 0
    %s159 = sadd.s32 %s158, 1
    %s160 = scalar_select %p157, %s158, %s159
    %p163 = pneg %p157
    %p164 = scmp.eq.s32.totalorder %s12, 1
    %p165 = por %p163, %p164
    %p166 = scmp.ne.s32.totalorder %s158, %s161
    %p167 = scmp.eq.s32.totalorder %s12, 0
    %p168 = por %p166, %p167
    %p169 = scmp.ne.s32.totalorder %s158, %s161
    %p170 = scmp.eq.s32.totalorder %s17, 1
    %p171 = por %p169, %p170
    %p172 = scmp.ne.s32.totalorder %s161, %s162
    %p173 = scmp.eq.s32.totalorder %s17, 0
    %p174 = por %p172, %p173
    %p175 = scmp.ne.s32.totalorder %s161, %s162
    %p176 = scmp.eq.s32.totalorder %s18, 1
    %p177 = por %p175, %p176
    %p179 = scmp.ne.s32.totalorder %s162, %s178
    %p180 = scmp.eq.s32.totalorder %s18, 0
    %p181 = por %p179, %p180
    %p182 = scmp.le.s32.totalorder 1, %s12
    %p183 = scmp.lt.s32.totalorder %s12, 3
    %p184 = pnand %p182, %p183
    %p185 = pneg %p184
    // Predicated region
    $region9: #{res_block2d_forward.5} parent=5 // pred_check
      _
    $region10: #{res_block2d_forward.5} parent=5 // pred_check_branch
      %187 = sbr.rel (%p184) target = $region12
    $region11: #{res_block2d_forward.5} parent=5 // pred_region
      %s188 = ssub.s32 %s12, 1
      // Predicated region
      $region13: #{res_block2d_forward.5} parent=11 // pred_check
        %p189 = pneg %p85
      $region14: #{res_block2d_forward.5} parent=11 // pred_check_branch
        %191 = sbr.rel (%p189) target = $region16
      $region15: #{res_block2d_forward.5} parent=11 // pred_region
        _
      $region16: #{res_block2d_forward.5} parent=11 // pred_fallthru
        _
      // Predicated region
      $region17: #{res_block2d_forward.5} parent=11 // pred_check
        %p192 = pneg %p106
      $region18: #{res_block2d_forward.5} parent=11 // pred_check_branch
        %194 = sbr.rel (%p192) target = $region20
      $region19: #{res_block2d_forward.5} parent=11 // pred_region
        _
      $region20: #{res_block2d_forward.5} parent=11 // pred_fallthru
        _
      // Predicated region
      $region21: #{res_block2d_forward.5} parent=11 // pred_check
        %p195 = pneg %p127
      $region22: #{res_block2d_forward.5} parent=11 // pred_check_branch
        %197 = sbr.rel (%p195) target = $region24
      $region23: #{res_block2d_forward.5} parent=11 // pred_region
        _
      $region24: #{res_block2d_forward.5} parent=11 // pred_fallthru
        _
      // Predicated region
      $region25: #{res_block2d_forward.5} parent=11 // pred_check
        %p198 = pneg %p148
      $region26: #{res_block2d_forward.5} parent=11 // pred_check_branch
        %200 = sbr.rel (%p198) target = $region28
      $region27: #{res_block2d_forward.5} parent=11 // pred_region
        _
      $region28: #{res_block2d_forward.5} parent=11 // pred_fallthru
        _
    $region12: #{res_block2d_forward.5} parent=5 // pred_fallthru
      _
    %p201 = scmp.lt.s32.totalorder %s12, 2
    // Predicated region
    $region29: #{res_block2d_forward.5} parent=5 // pred_check
      %p202 = pneg %p201
    $region30: #{res_block2d_forward.5} parent=5 // pred_check_branch
      %204 = sbr.rel (%p202) target = $region32
    $region31: #{res_block2d_forward.5} parent=5 // pred_region
      // Predicated region
      $region33: #{res_block2d_forward.5} parent=31 // pred_check
        %p205 = pneg %p32
      $region34: #{res_block2d_forward.5} parent=31 // pred_check_branch
        %207 = sbr.rel (%p205) target = $region36
      $region35: #{res_block2d_forward.5} parent=31 // pred_region
        %p208 = scmp.lt.s32.totalorder %s12, 1
        %s209 = scalar_select %p208, %s12, 1
        %s210 = smul.addr %s209, 2
        %s211 = smul.addr %s210, 4
        %s212 = scalar_lea.vmem %s0, %s211
      $region36: #{res_block2d_forward.5} parent=31 // pred_fallthru
        _
      // Predicated region
      $region37: #{res_block2d_forward.5} parent=31 // pred_check
        %p213 = pneg %p58
      $region38: #{res_block2d_forward.5} parent=31 // pred_check_branch
        %215 = sbr.rel (%p213) target = $region40
      $region39: #{res_block2d_forward.5} parent=31 // pred_region
        %p216 = scmp.lt.s32.totalorder %s12, 1
        %s217 = scalar_select %p216, %s12, 1
        %s218 = smul.addr %s217, 2
        %s219 = smul.addr %s218, 4
        %s220 = scalar_lea.vmem %s1, %s219
      $region40: #{res_block2d_forward.5} parent=31 // pred_fallthru
        _
    $region32: #{res_block2d_forward.5} parent=5 // pred_fallthru
      _
    %p221 = scmp.le.s32.totalorder 1, %s12
    %p222 = scmp.lt.s32.totalorder %s12, 3
    %p223 = pnand %p221, %p222
    %p224 = pneg %p223
    // Predicated region
    $region41: #{res_block2d_forward.5} parent=5 // pred_check
      _
    $region42: #{res_block2d_forward.5} parent=5 // pred_check_branch
      %226 = sbr.rel (%p223) target = $region44
    $region43: #{res_block2d_forward.5} parent=5 // pred_region
      %s227 = ssub.s32 %s12, 1
      %p228 = scmp.lt.s32.totalorder %s17, 1
      %s229 = scalar_select %p228, %s17, 1
      %s230 = smul.addr %s229, 2
      %s231 = smul.addr %s230, 4
      %s232 = scalar_lea.vmem %s0, %s231
      %p233 = pneg %p38
      %p234 = pneg %p35
      %p235 = scmp.lt.s32.totalorder %s17, 1
      %s236 = scalar_select %p235, %s17, 1
      %s237 = smul.addr %s236, 2
      %s238 = smul.addr %s237, 4
      %s239 = scalar_lea.vmem %s1, %s238
      %p240 = pneg %p64
      %p241 = pneg %p61
      %p242 = pneg %p85
      %p243 = pneg %p82
      %p244 = pneg %p106
      %p245 = pneg %p103
      %p246 = pneg %p127
      %p247 = pneg %p124
      %p248 = pneg %p148
      %p249 = pneg %p145
      %p250 = pneg %p174
      %p251 = pneg %p171
      %p252 = scmp.lt.s32.totalorder %s17, 1
      %s253 = scalar_select %p252, %s17, 1
      %s254 = smul.addr %s253, 2
      %s255 = smul.addr %s254, 8
      %s256 = scalar_lea.vmem %s6, %s255
      %p257 = scmp.lt.s32.totalorder %s17, 1
      %s258 = scalar_select %p257, %s17, 1
      %s259 = smul.addr %s258, 2
      %s260 = smul.addr %s259, 4
      %s261 = scalar_lea.vmem %s0, %s260
      %p262 = scmp.lt.s32.totalorder %s17, 1
      %s263 = scalar_select %p262, %s17, 1
      %s264 = smul.addr %s263, 2
      %s265 = smul.addr %s264, 4
      %s266 = scalar_lea.vmem %s1, %s265
      %p267 = scmp.lt.s32.totalorder %s17, 1
      %s268 = scalar_select %p267, %s17, 1
      %s269 = smul.addr %s268, 2
      %s270 = smul.addr %s269, 8
      %s271 = scalar_lea.vmem %s6, %s270
      %v273 = vld [vmem:[%s2] sm:$0xff]
      %v274 = vld [vmem:[%s3] sm:$0xff]
      %v275 = vld [vmem:[%s4] sm:$0xf]
      %v276 = vld [vmem:[%s5] sm:$0xff]
      %v277 = vld [vmem:[%s266] sm:$0xff]
      %v279 = vcombine.high %v277, %v277
      %v281 = vpack.c.bf16 %v277, %v277
      %v282 = vpack.c.bf16 %v279, %v279
      %284 = vset.pattern.permute.xlu0 0
      %285 = vperm.xlu0 %284, %v276
      %v286 = vpop.permute.xlu0 %285
      %vm288 = vcmask 31744
      %v290 = vsel %vm288, %v275, 0
      %vm292 = vcmask 1041408
      %v294 = vsel %vm292, %v281, 0
      %v297 = vsel %vm292, %v282, 0
      %299 = vmatprep.subr.bf16.mxu0 %v297
      %300 = vmatpush1.bf16.msra.mxu0 %v294
      %301 = vmatprep.subr.bf16.mxu0 0
      %302 = vmatpush1.bf16.msra.mxu0 0
      %303 = vmatprep.subr.bf16.mxu0 0
      %304 = vmatpush1.bf16.msra.mxu0 0
      %305 = vmatprep.subr.bf16.mxu0 0
      %306 = vmatpush1.bf16.msra.mxu0 0
      %307 = vmatprep.subr.bf16.mxu0 0
      %308 = vmatpush1.bf16.msra.mxu0 0
      %309 = vmatprep.subr.bf16.mxu0 0
      %310 = vmatpush1.bf16.msra.mxu0 0
      %311 = vmatprep.subr.bf16.mxu0 0
      %312 = vmatpush1.bf16.msra.mxu0 0
      %313 = vmatprep.subr.bf16.mxu0 0
      %314 = vmatpush1.bf16.msra.mxu0 0
      %315 = vmatprep.subr.bf16.mxu0 0
      %316 = vmatpush1.bf16.msra.mxu0 0
      %317 = vmatprep.subr.bf16.mxu0 0
      %318 = vmatpush1.bf16.msra.mxu0 0
      %319 = vmatprep.subr.bf16.mxu0 0
      %320 = vmatpush1.bf16.msra.mxu0 0
      %321 = vmatprep.subr.bf16.mxu0 0
      %322 = vmatpush1.bf16.msra.mxu0 0
      %323 = vmatprep.subr.bf16.mxu0 0
      %324 = vmatpush1.bf16.msra.mxu0 0
      %325 = vmatprep.subr.bf16.mxu0 0
      %326 = vmatpush1.bf16.msra.mxu0 0
      %327 = vmatprep.subr.bf16.mxu0 0
      %328 = vmatpush1.bf16.msra.mxu0 0
      %329 = vmatprep.subr.bf16.mxu0 0
      %330 = vmatpush1.bf16.msra.mxu0 0
      %331 = vmatprep.mubr.bf16.mxu0 0
      %332 = vmatmul.mubr.bf16.gmra.mrb[0].mxu0 %v290
      %v333 = vpop.f32.mrb[0].mxu0
      %v334 = vadd.f32 %v286, %v333
      %v335 = vpop.f32.mrb[0].mxu0
      %v336 = vadd.f32 %v286, %v335
      %v337 = vpop.f32.mrb[0].mxu0
      %v338 = vpop.f32.mrb[0].mxu0
      %339 = vdwg.mxu0
      %v340 = vld [vmem:[%s261] sm:$0xff]
      %v341 = vunpack.c.l.bf16 %v340
      %v342 = vunpack.c.h.bf16 %v340
      %344 = vset.pattern.permute.xlu0 0
      %345 = vperm.xlu0 %344, %v273
      %v346 = vpop.permute.xlu0 %345
      %v348 = vmul.f32 %v341, %v346
      %v349 = vmul.f32 %v342, %v346
      %351 = vset.pattern.permute.xlu0 0
      %352 = vperm.xlu0 %351, %v274
      %v353 = vpop.permute.xlu0 %352
      %v355 = vadd.f32 %v348, %v353
      %v356 = vadd.f32 %v349, %v353
      %v357 = vadd.f32 %v355, %v334
      %v358 = vadd.f32 %v356, %v336
      %359 = vst [vmem:[%s271] sm:$0xff] %v357
      %360 = vst [vmem:[%s271 + $0x8] sm:$0xff] %v358
      %p361 = scmp.lt.s32.totalorder %s17, 1
      %s362 = scalar_select %p361, %s17, 1
      %s363 = smul.addr %s362, 2
      %s364 = smul.addr %s363, 8
      %s365 = scalar_lea.vmem %s6, %s364
      // Predicated region
      $region45: #{res_block2d_forward.5} parent=43 // pred_check
        %p366 = pneg %p171
      $region46: #{res_block2d_forward.5} parent=43 // pred_check_branch
        %368 = sbr.rel (%p366) target = $region48
      $region47: #{res_block2d_forward.5} parent=43 // pred_region
        _
      $region48: #{res_block2d_forward.5} parent=43 // pred_fallthru
        _
    $region44: #{res_block2d_forward.5} parent=5 // pred_fallthru
      _
    %p369 = scmp.le.s32.totalorder 2, %s12
    // Predicated region
    $region49: #{res_block2d_forward.5} parent=5 // pred_check
      %p370 = pneg %p369
    $region50: #{res_block2d_forward.5} parent=5 // pred_check_branch
      %372 = sbr.rel (%p370) target = $region52
    $region51: #{res_block2d_forward.5} parent=5 // pred_region
      %s373 = ssub.s32 %s12, 2
      // Predicated region
      $region53: #{res_block2d_forward.5} parent=51 // pred_check
        %p374 = pneg %p177
      $region54: #{res_block2d_forward.5} parent=51 // pred_check_branch
        %376 = sbr.rel (%p374) target = $region56
      $region55: #{res_block2d_forward.5} parent=51 // pred_region
        %p377 = scmp.lt.s32.totalorder %s18, 1
        %s378 = scalar_select %p377, %s18, 1
        %s379 = smul.addr %s378, 2
        %s380 = smul.addr %s379, 8
        %s381 = scalar_lea.vmem %s6, %s380
      $region56: #{res_block2d_forward.5} parent=51 // pred_fallthru
        _
    $region52: #{res_block2d_forward.5} parent=5 // pred_fallthru
      _
  $region6: #{res_block2d_forward.5} parent=0 // loop_footer
    %s16 = sadd.s32 1, %s12
  $region7: #{res_block2d_forward.5} parent=0 // loop_footer_branch
    %11 = sbr.rel target = $region3
  $region8: #{res_block2d_forward.5} parent=0 // loop_exit
    _

// kernel: res_block2d_forward.4
$region0: #{res_block2d_forward.4}
  #allocation0 [shape = 'u32[]', space=smem, size = 0x4, offset = 0x4, fixed_abs, tag = 'smem constant byte address 0x4 - core index']
  #allocation1 [shape = 'u32[144,128]{1,0:T(1,128)}', space=vmem, size = 0x12000, scoped, tag = 'internal scratch']
  %s0 = inlined_call_operand.vmem [shape: bf16[2,8,256], index: 0, kind: input, shape index: {}]
  %s1 = inlined_call_operand.vmem [shape: f32[8,1], index: 1, kind: input, shape index: {}]
  %s2 = inlined_call_operand.vmem [shape: f32[8,1], index: 2, kind: input, shape index: {}]
  %s3 = inlined_call_operand.vmem [shape: bf16[3,8,8], index: 3, kind: input, shape index: {}]
  %s4 = inlined_call_operand.vmem [shape: f32[1,256], index: 4, kind: input, shape index: {}]
  %s5 = inlined_call_operand.vmem [shape: f32[1,256], index: 5, kind: input, shape index: {}]
  %s6 = inlined_call_operand.vmem [shape: bf16[2,8,256], index: 6, kind: output, shape index: {0}]
  %s7 = inlined_call_operand.vmem [shape: f32[2,8,128], index: 7, kind: output, shape index: {1}]
  %s8 = inlined_call_operand.vmem [shape: f32[2,8,128], index: 8, kind: output, shape index: {2}]
  %9 = xla_tuple %s6, %s7, %s8
  %s10 = sld [smem:[#allocation0]]
  $region73: #{res_block2d_forward.4} parent=0
    _
  %s12 = ssub.s32 1, %s10
  %s13 = scalar_select 0, %s12, %s10
  loop: start=0, step=1, limit=4
  $region2: #{res_block2d_forward.4} parent=0 // loop_pre_header
    _
  $region3: #{res_block2d_forward.4} parent=0 // loop_header
    %s15 = sphi 0, %s19
    %p16 = scmp.ge.s32.totalorder %s15, 4
    %s25 = sphi 0, %s27
    %s28 = sphi 0, %s25
    %s29 = sphi 0, %s28
    %s45 = sphi 0, %s29
    %s49 = sphi 0, %s49
    %s51 = sphi 0, %s49
    %s52 = sphi 0, %s51
    %s66 = sphi 0, %s52
    %s70 = sphi 0, %s70
    %s72 = sphi 0, %s70
    %s73 = sphi 0, %s72
    %s87 = sphi 0, %s73
    %s91 = sphi 0, %s91
    %s93 = sphi 0, %s91
    %s94 = sphi 0, %s93
    %s108 = sphi 0, %s94
    %s112 = sphi 0, %s112
    %s114 = sphi 0, %s112
    %s115 = sphi 0, %s114
    %s129 = sphi 0, %s115
    %s133 = sphi 0, %s133
    %s135 = sphi 0, %s133
    %s136 = sphi 0, %s135
    %s150 = sphi 0, %s136
    %s156 = sphi 0, %s158
    %s159 = sphi 0, %s156
    %s160 = sphi 0, %s159
    %s176 = sphi 0, %s160
    %s182 = sphi 0, %s184
    %s185 = sphi 0, %s182
    %s186 = sphi 0, %s185
    %s202 = sphi 0, %s186
    %s208 = sphi 0, %s210
    %s211 = sphi 0, %s208
    %s212 = sphi 0, %s211
    %s228 = sphi 0, %s212
  $region4: #{res_block2d_forward.4} parent=0 // loop_header_branch
    %18 = sbr.rel (%p16) target = $region8
  $region5: #{res_block2d_forward.4} parent=0 // loop_body
    %s20 = ssub.s32 %s15, 1
    %s21 = ssub.s32 %s15, 2
    %s22 = sadd.s32 %s15, 1
    %s23 = ssub.s32 %s15, %s22
    %p24 = scmp.eq.s32.totalorder %s23, 0
    %s26 = sadd.s32 %s25, 1
    %s27 = scalar_select %p24, %s25, %s26
    %p30 = pneg %p24
    %p31 = scmp.eq.s32.totalorder %s15, 1
    %p32 = por %p30, %p31
    %p33 = scmp.ne.s32.totalorder %s25, %s28
    %p34 = scmp.eq.s32.totalorder %s15, 0
    %p35 = por %p33, %p34
    %p36 = scmp.ne.s32.totalorder %s25, %s28
    %p37 = scmp.eq.s32.totalorder %s20, 1
    %p38 = por %p36, %p37
    %p39 = scmp.ne.s32.totalorder %s28, %s29
    %p40 = scmp.eq.s32.totalorder %s20, 0
    %p41 = por %p39, %p40
    %p42 = scmp.ne.s32.totalorder %s28, %s29
    %p43 = scmp.eq.s32.totalorder %s21, 1
    %p44 = por %p42, %p43
    %p46 = scmp.ne.s32.totalorder %s29, %s45
    %p47 = scmp.eq.s32.totalorder %s21, 0
    %p48 = por %p46, %p47
    %s50 = sadd.s32 %s49, 1
    %p53 = scmp.eq.s32.totalorder %s15, 1
    %p54 = scmp.ne.s32.totalorder %s49, %s51
    %p55 = scmp.eq.s32.totalorder %s15, 0
    %p56 = por %p54, %p55
    %p57 = scmp.ne.s32.totalorder %s49, %s51
    %p58 = scmp.eq.s32.totalorder %s20, 1
    %p59 = por %p57, %p58
    %p60 = scmp.ne.s32.totalorder %s51, %s52
    %p61 = scmp.eq.s32.totalorder %s20, 0
    %p62 = por %p60, %p61
    %p63 = scmp.ne.s32.totalorder %s51, %s52
    %p64 = scmp.eq.s32.totalorder %s21, 1
    %p65 = por %p63, %p64
    %p67 = scmp.ne.s32.totalorder %s52, %s66
    %p68 = scmp.eq.s32.totalorder %s21, 0
    %p69 = por %p67, %p68
    %s71 = sadd.s32 %s70, 1
    %p74 = scmp.eq.s32.totalorder %s15, 1
    %p75 = scmp.ne.s32.totalorder %s70, %s72
    %p76 = scmp.eq.s32.totalorder %s15, 0
    %p77 = por %p75, %p76
    %p78 = scmp.ne.s32.totalorder %s70, %s72
    %p79 = scmp.eq.s32.totalorder %s20, 1
    %p80 = por %p78, %p79
    %p81 = scmp.ne.s32.totalorder %s72, %s73
    %p82 = scmp.eq.s32.totalorder %s20, 0
    %p83 = por %p81, %p82
    %p84 = scmp.ne.s32.totalorder %s72, %s73
    %p85 = scmp.eq.s32.totalorder %s21, 1
    %p86 = por %p84, %p85
    %p88 = scmp.ne.s32.totalorder %s73, %s87
    %p89 = scmp.eq.s32.totalorder %s21, 0
    %p90 = por %p88, %p89
    %s92 = sadd.s32 %s91, 1
    %p95 = scmp.eq.s32.totalorder %s15, 1
    %p96 = scmp.ne.s32.totalorder %s91, %s93
    %p97 = scmp.eq.s32.totalorder %s15, 0
    %p98 = por %p96, %p97
    %p99 = scmp.ne.s32.totalorder %s91, %s93
    %p100 = scmp.eq.s32.totalorder %s20, 1
    %p101 = por %p99, %p100
    %p102 = scmp.ne.s32.totalorder %s93, %s94
    %p103 = scmp.eq.s32.totalorder %s20, 0
    %p104 = por %p102, %p103
    %p105 = scmp.ne.s32.totalorder %s93, %s94
    %p106 = scmp.eq.s32.totalorder %s21, 1
    %p107 = por %p105, %p106
    %p109 = scmp.ne.s32.totalorder %s94, %s108
    %p110 = scmp.eq.s32.totalorder %s21, 0
    %p111 = por %p109, %p110
    %s113 = sadd.s32 %s112, 1
    %p116 = scmp.eq.s32.totalorder %s15, 1
    %p117 = scmp.ne.s32.totalorder %s112, %s114
    %p118 = scmp.eq.s32.totalorder %s15, 0
    %p119 = por %p117, %p118
    %p120 = scmp.ne.s32.totalorder %s112, %s114
    %p121 = scmp.eq.s32.totalorder %s20, 1
    %p122 = por %p120, %p121
    %p123 = scmp.ne.s32.totalorder %s114, %s115
    %p124 = scmp.eq.s32.totalorder %s20, 0
    %p125 = por %p123, %p124
    %p126 = scmp.ne.s32.totalorder %s114, %s115
    %p127 = scmp.eq.s32.totalorder %s21, 1
    %p128 = por %p126, %p127
    %p130 = scmp.ne.s32.totalorder %s115, %s129
    %p131 = scmp.eq.s32.totalorder %s21, 0
    %p132 = por %p130, %p131
    %s134 = sadd.s32 %s133, 1
    %p137 = scmp.eq.s32.totalorder %s15, 1
    %p138 = scmp.ne.s32.totalorder %s133, %s135
    %p139 = scmp.eq.s32.totalorder %s15, 0
    %p140 = por %p138, %p139
    %p141 = scmp.ne.s32.totalorder %s133, %s135
    %p142 = scmp.eq.s32.totalorder %s20, 1
    %p143 = por %p141, %p142
    %p144 = scmp.ne.s32.totalorder %s135, %s136
    %p145 = scmp.eq.s32.totalorder %s20, 0
    %p146 = por %p144, %p145
    %p147 = scmp.ne.s32.totalorder %s135, %s136
    %p148 = scmp.eq.s32.totalorder %s21, 1
    %p149 = por %p147, %p148
    %p151 = scmp.ne.s32.totalorder %s136, %s150
    %p152 = scmp.eq.s32.totalorder %s21, 0
    %p153 = por %p151, %p152
    %s154 = ssub.s32 %s15, %s22
    %p155 = scmp.eq.s32.totalorder %s154, 0
    %s157 = sadd.s32 %s156, 1
    %s158 = scalar_select %p155, %s156, %s157
    %p161 = pneg %p155
    %p162 = scmp.eq.s32.totalorder %s15, 1
    %p163 = por %p161, %p162
    %p164 = scmp.ne.s32.totalorder %s156, %s159
    %p165 = scmp.eq.s32.totalorder %s15, 0
    %p166 = por %p164, %p165
    %p167 = scmp.ne.s32.totalorder %s156, %s159
    %p168 = scmp.eq.s32.totalorder %s20, 1
    %p169 = por %p167, %p168
    %p170 = scmp.ne.s32.totalorder %s159, %s160
    %p171 = scmp.eq.s32.totalorder %s20, 0
    %p172 = por %p170, %p171
    %p173 = scmp.ne.s32.totalorder %s159, %s160
    %p174 = scmp.eq.s32.totalorder %s21, 1
    %p175 = por %p173, %p174
    %p177 = scmp.ne.s32.totalorder %s160, %s176
    %p178 = scmp.eq.s32.totalorder %s21, 0
    %p179 = por %p177, %p178
    %s180 = ssub.s32 %s15, %s22
    %p181 = scmp.eq.s32.totalorder %s180, 0
    %s183 = sadd.s32 %s182, 1
    %s184 = scalar_select %p181, %s182, %s183
    %p187 = pneg %p181
    %p188 = scmp.eq.s32.totalorder %s15, 1
    %p189 = por %p187, %p188
    %p190 = scmp.ne.s32.totalorder %s182, %s185
    %p191 = scmp.eq.s32.totalorder %s15, 0
    %p192 = por %p190, %p191
    %p193 = scmp.ne.s32.totalorder %s182, %s185
    %p194 = scmp.eq.s32.totalorder %s20, 1
    %p195 = por %p193, %p194
    %p196 = scmp.ne.s32.totalorder %s185, %s186
    %p197 = scmp.eq.s32.totalorder %s20, 0
    %p198 = por %p196, %p197
    %p199 = scmp.ne.s32.totalorder %s185, %s186
    %p200 = scmp.eq.s32.totalorder %s21, 1
    %p201 = por %p199, %p200
    %p203 = scmp.ne.s32.totalorder %s186, %s202
    %p204 = scmp.eq.s32.totalorder %s21, 0
    %p205 = por %p203, %p204
    %s206 = ssub.s32 %s15, %s22
    %p207 = scmp.eq.s32.totalorder %s206, 0
    %s209 = sadd.s32 %s208, 1
    %s210 = scalar_select %p207, %s208, %s209
    %p213 = pneg %p207
    %p214 = scmp.eq.s32.totalorder %s15, 1
    %p215 = por %p213, %p214
    %p216 = scmp.ne.s32.totalorder %s208, %s211
    %p217 = scmp.eq.s32.totalorder %s15, 0
    %p218 = por %p216, %p217
    %p219 = scmp.ne.s32.totalorder %s208, %s211
    %p220 = scmp.eq.s32.totalorder %s20, 1
    %p221 = por %p219, %p220
    %p222 = scmp.ne.s32.totalorder %s211, %s212
    %p223 = scmp.eq.s32.totalorder %s20, 0
    %p224 = por %p222, %p223
    %p225 = scmp.ne.s32.totalorder %s211, %s212
    %p226 = scmp.eq.s32.totalorder %s21, 1
    %p227 = por %p225, %p226
    %p229 = scmp.ne.s32.totalorder %s212, %s228
    %p230 = scmp.eq.s32.totalorder %s21, 0
    %p231 = por %p229, %p230
    %p232 = scmp.le.s32.totalorder 1, %s15
    %p233 = scmp.lt.s32.totalorder %s15, 3
    %p234 = pnand %p232, %p233
    %p235 = pneg %p234
    // Predicated region
    $region9: #{res_block2d_forward.4} parent=5 // pred_check
      _
    $region10: #{res_block2d_forward.4} parent=5 // pred_check_branch
      %237 = sbr.rel (%p234) target = $region12
    $region11: #{res_block2d_forward.4} parent=5 // pred_region
      %s238 = ssub.s32 %s15, 1
      // Predicated region
      $region13: #{res_block2d_forward.4} parent=11 // pred_check
        %p239 = pneg %p62
      $region14: #{res_block2d_forward.4} parent=11 // pred_check_branch
        %241 = sbr.rel (%p239) target = $region16
      $region15: #{res_block2d_forward.4} parent=11 // pred_region
        _
      $region16: #{res_block2d_forward.4} parent=11 // pred_fallthru
        _
      // Predicated region
      $region17: #{res_block2d_forward.4} parent=11 // pred_check
        %p242 = pneg %p83
      $region18: #{res_block2d_forward.4} parent=11 // pred_check_branch
        %244 = sbr.rel (%p242) target = $region20
      $region19: #{res_block2d_forward.4} parent=11 // pred_region
        _
      $region20: #{res_block2d_forward.4} parent=11 // pred_fallthru
        _
      // Predicated region
      $region21: #{res_block2d_forward.4} parent=11 // pred_check
        %p245 = pneg %p104
      $region22: #{res_block2d_forward.4} parent=11 // pred_check_branch
        %247 = sbr.rel (%p245) target = $region24
      $region23: #{res_block2d_forward.4} parent=11 // pred_region
        _
      $region24: #{res_block2d_forward.4} parent=11 // pred_fallthru
        _
      // Predicated region
      $region25: #{res_block2d_forward.4} parent=11 // pred_check
        %p248 = pneg %p125
      $region26: #{res_block2d_forward.4} parent=11 // pred_check_branch
        %250 = sbr.rel (%p248) target = $region28
      $region27: #{res_block2d_forward.4} parent=11 // pred_region
        _
      $region28: #{res_block2d_forward.4} parent=11 // pred_fallthru
        _
      // Predicated region
      $region29: #{res_block2d_forward.4} parent=11 // pred_check
        %p251 = pneg %p146
      $region30: #{res_block2d_forward.4} parent=11 // pred_check_branch
        %253 = sbr.rel (%p251) target = $region32
      $region31: #{res_block2d_forward.4} parent=11 // pred_region
        _
      $region32: #{res_block2d_forward.4} parent=11 // pred_fallthru
        _
    $region12: #{res_block2d_forward.4} parent=5 // pred_fallthru
      _
    %p254 = scmp.lt.s32.totalorder %s15, 2
    // Predicated region
    $region33: #{res_block2d_forward.4} parent=5 // pred_check
      %p255 = pneg %p254
    $region34: #{res_block2d_forward.4} parent=5 // pred_check_branch
      %257 = sbr.rel (%p255) target = $region36
    $region35: #{res_block2d_forward.4} parent=5 // pred_region
      // Predicated region
      $region37: #{res_block2d_forward.4} parent=35 // pred_check
        %p258 = pneg %p35
      $region38: #{res_block2d_forward.4} parent=35 // pred_check_branch
        %260 = sbr.rel (%p258) target = $region40
      $region39: #{res_block2d_forward.4} parent=35 // pred_region
        %p261 = scmp.lt.s32.totalorder %s15, 1
        %s262 = scalar_select %p261, %s15, 1
        %s263 = smul.addr %s262, 2
        %s264 = smul.addr %s263, 4
        %s265 = scalar_lea.vmem %s0, %s264
      $region40: #{res_block2d_forward.4} parent=35 // pred_fallthru
        _
    $region36: #{res_block2d_forward.4} parent=5 // pred_fallthru
      _
    %p266 = scmp.le.s32.totalorder 1, %s15
    %p267 = scmp.lt.s32.totalorder %s15, 3
    %p268 = pnand %p266, %p267
    %p269 = pneg %p268
    // Predicated region
    $region41: #{res_block2d_forward.4} parent=5 // pred_check
      _
    $region42: #{res_block2d_forward.4} parent=5 // pred_check_branch
      %271 = sbr.rel (%p268) target = $region44
    $region43: #{res_block2d_forward.4} parent=5 // pred_region
      %s272 = ssub.s32 %s15, 1
      %p273 = scmp.lt.s32.totalorder %s20, 1
      %s274 = scalar_select %p273, %s20, 1
      %s275 = smul.addr %s274, 2
      %s276 = smul.addr %s275, 4
      %s277 = scalar_lea.vmem %s0, %s276
      %p278 = pneg %p41
      %p279 = pneg %p38
      %p280 = pneg %p62
      %p281 = pneg %p59
      %p282 = pneg %p83
      %p283 = pneg %p80
      %p284 = pneg %p104
      %p285 = pneg %p101
      %p286 = pneg %p125
      %p287 = pneg %p122
      %p288 = pneg %p146
      %p289 = pneg %p143
      %p290 = pneg %p172
      %p291 = pneg %p169
      %p292 = scmp.lt.s32.totalorder %s20, 1
      %s293 = scalar_select %p292, %s20, 1
      %s294 = smul.addr %s293, 2
      %s295 = smul.addr %s294, 4
      %s296 = scalar_lea.vmem %s6, %s295
      %p297 = pneg %p198
      %p298 = pneg %p195
      %p299 = scmp.lt.s32.totalorder %s20, 1
      %s300 = scalar_select %p299, %s20, 1
      %s301 = smul.addr %s300, 8
      %s302 = scalar_lea.vmem %s7, %s301
      %p303 = pneg %p224
      %p304 = pneg %p221
      %p305 = scmp.lt.s32.totalorder %s20, 1
      %s306 = scalar_select %p305, %s20, 1
      %s307 = smul.addr %s306, 8
      %s308 = scalar_lea.vmem %s8, %s307
      %p309 = scmp.lt.s32.totalorder %s20, 1
      %s310 = scalar_select %p309, %s20, 1
      %s311 = smul.addr %s310, 2
      %s312 = smul.addr %s311, 4
      %s313 = scalar_lea.vmem %s0, %s312
      %p314 = scmp.lt.s32.totalorder %s20, 1
      %s315 = scalar_select %p314, %s20, 1
      %s316 = smul.addr %s315, 2
      %s317 = smul.addr %s316, 4
      %s318 = scalar_lea.vmem %s6, %s317
      %p319 = scmp.lt.s32.totalorder %s20, 1
      %s320 = scalar_select %p319, %s20, 1
      %s321 = smul.addr %s320, 8
      %s322 = scalar_lea.vmem %s7, %s321
      %p323 = scmp.lt.s32.totalorder %s20, 1
      %s324 = scalar_select %p323, %s20, 1
      %s325 = smul.addr %s324, 8
      %s326 = scalar_lea.vmem %s8, %s325
      %v328 = vld [vmem:[%s1] sm:$0xff]
      %v329 = vld [vmem:[%s2] sm:$0xff]
      %v330 = vld [vmem:[%s4] sm:$0x3]
      %v331 = vld [vmem:[%s5] sm:$0x3]
      %v332 = vld [vmem:[%s3] sm:$0xf]
      %s333 = scalar_lea.vmem %s3, 4
      %v334 = vld [vmem:[%s333] sm:$0xf]
      %s335 = scalar_lea.vmem %s3, 8
      %v336 = vld [vmem:[%s335] sm:$0xf]
      %v337 = vld [vmem:[%s313] sm:$0xff]
      %v338 = vunpack.c.l.bf16 %v337
      %v339 = vunpack.c.h.bf16 %v337
      %341 = vset.pattern.permute.xlu0 0
      %342 = vperm.xlu0 %341, %v328
      %v343 = vpop.permute.xlu0 %342
      %v345 = vmul.f32 %v338, %v343
      %v346 = vmul.f32 %v339, %v343
      %348 = vset.pattern.permute.xlu0 0
      %349 = vperm.xlu0 %348, %v329
      %v350 = vpop.permute.xlu0 %349
      %v352 = vadd.f32 %v345, %v350
      %v353 = vadd.f32 %v346, %v350
      %v354 = vmax.f32 %v352, 0.0
      %v355 = vmax.f32 %v353, 0.0
      %356 = vrot.lane.b32.xlu0 %v354, 16
      %v357 = vpop.permute.xlu0 %356
      %358 = vrot.lane.b32.xlu0 %v355, 16
      %v359 = vpop.permute.xlu0 %358
      %v360 = vlaneseq
      %v361 = vand.u32 %v360, 127
      %vm362 = vcmp.lt.s32.totalorder %v361, 16
      %v363 = vsel %vm362, %v357, %v359
      %v364 = vsel %vm362, %v359, %v357
      %v366 = vlaneseq
      %v367 = vshrl.u32 %v366, 7
      %v368 = vsub.s32 0, %v367
      %v369 = vrot.slane %v330, %v368
      %v370 = vlaneseq
      %v371 = vshrl.u32 %v370, 7
      %v372 = vsub.s32 1, %v371
      %v373 = vrot.slane %v330, %v372
      %v376 = vmul.f32 %v364, %v369
      %v377 = vmul.f32 %v363, %v373
      %378 = vrot.lane.b32.xlu0 %v354, 112
      %v379 = vpop.permute.xlu0 %378
      %380 = vrot.lane.b32.xlu0 %v355, 112
      %v381 = vpop.permute.xlu0 %380
      %vm382 = vcmp.lt.s32.totalorder %v361, 112
      %v383 = vsel %vm382, %v379, %v381
      %v384 = vsel %vm382, %v381, %v379
      %v386 = vlaneseq
      %v387 = vshrl.u32 %v386, 7
      %v388 = vsub.s32 0, %v387
      %v389 = vrot.slane %v331, %v388
      %v390 = vlaneseq
      %v391 = vshrl.u32 %v390, 7
      %v392 = vsub.s32 1, %v391
      %v393 = vrot.slane %v331, %v392
      %v396 = vmul.f32 %v383, %v389
      %v397 = vmul.f32 %v384, %v393
      %v398 = vpack.c.bf16 %v354, %v354
      %v399 = vpack.c.bf16 %v355, %v355
      %v400 = vpack.c.bf16 %v376, %v376
      %v401 = vpack.c.bf16 %v377, %v377
      %vm402 = vcmask 64512
      %v404 = vsel %vm402, %v332, 0
      %vm406 = vcmask 1043456
      %v408 = vsel %vm406, %v400, 0
      %v411 = vsel %vm406, %v401, 0
      %413 = vmatprep.subr.bf16.mxu0 %v411
      %414 = vmatpush1.bf16.msra.mxu0 %v408
      %415 = vmatprep.subr.bf16.mxu0 0
      %416 = vmatpush1.bf16.msra.mxu0 0
      %417 = vmatprep.subr.bf16.mxu0 0
      %418 = vmatpush1.bf16.msra.mxu0 0
      %419 = vmatprep.subr.bf16.mxu0 0
      %420 = vmatpush1.bf16.msra.mxu0 0
      %421 = vmatprep.subr.bf16.mxu0 0
      %422 = vmatpush1.bf16.msra.mxu0 0
      %423 = vmatprep.subr.bf16.mxu0 0
      %424 = vmatpush1.bf16.msra.mxu0 0
      %425 = vmatprep.subr.bf16.mxu0 0
      %426 = vmatpush1.bf16.msra.mxu0 0
      %427 = vmatprep.subr.bf16.mxu0 0
      %428 = vmatpush1.bf16.msra.mxu0 0
      %429 = vmatprep.subr.bf16.mxu0 0
      %430 = vmatpush1.bf16.msra.mxu0 0
      %431 = vmatprep.subr.bf16.mxu0 0
      %432 = vmatpush1.bf16.msra.mxu0 0
      %433 = vmatprep.subr.bf16.mxu0 0
      %434 = vmatpush1.bf16.msra.mxu0 0
      %435 = vmatprep.subr.bf16.mxu0 0
      %436 = vmatpush1.bf16.msra.mxu0 0
      %437 = vmatprep.subr.bf16.mxu0 0
      %438 = vmatpush1.bf16.msra.mxu0 0
      %439 = vmatprep.subr.bf16.mxu0 0
      %440 = vmatpush1.bf16.msra.mxu0 0
      %441 = vmatprep.subr.bf16.mxu0 0
      %442 = vmatpush1.bf16.msra.mxu0 0
      %443 = vmatprep.subr.bf16.mxu0 0
      %444 = vmatpush1.bf16.msra.mxu0 0
      %445 = vmatprep.mubr.bf16.mxu0 0
      %446 = vmatmul.mubr.bf16.gmra.mrb[0].mxu0 %v404
      %v447 = vpop.f32.mrb[0].mxu0
      %v448 = vadd.f32 0.0, %v447
      %v449 = vpop.f32.mrb[0].mxu0
      %v450 = vadd.f32 0.0, %v449
      %v451 = vpop.f32.mrb[0].mxu0
      %v452 = vpop.f32.mrb[0].mxu0
      %453 = vdwg.mxu0
      %v455 = vsel %vm402, %v334, 0
      %v458 = vsel %vm406, %v398, 0
      %v461 = vsel %vm406, %v399, 0
      %463 = vmatprep.subr.bf16.mxu0 %v461
      %464 = vmatpush1.bf16.msra.mxu0 %v458
      %465 = vmatprep.subr.bf16.mxu0 0
      %466 = vmatpush1.bf16.msra.mxu0 0
      %467 = vmatprep.subr.bf16.mxu0 0
      %468 = vmatpush1.bf16.msra.mxu0 0
      %469 = vmatprep.subr.bf16.mxu0 0
      %470 = vmatpush1.bf16.msra.mxu0 0
      %471 = vmatprep.subr.bf16.mxu0 0
      %472 = vmatpush1.bf16.msra.mxu0 0
      %473 = vmatprep.subr.bf16.mxu0 0
      %474 = vmatpush1.bf16.msra.mxu0 0
      %475 = vmatprep.subr.bf16.mxu0 0
      %476 = vmatpush1.bf16.msra.mxu0 0
      %477 = vmatprep.subr.bf16.mxu0 0
      %478 = vmatpush1.bf16.msra.mxu0 0
      %479 = vmatprep.subr.bf16.mxu0 0
      %480 = vmatpush1.bf16.msra.mxu0 0
      %481 = vmatprep.subr.bf16.mxu0 0
      %482 = vmatpush1.bf16.msra.mxu0 0
      %483 = vmatprep.subr.bf16.mxu0 0
      %484 = vmatpush1.bf16.msra.mxu0 0
      %485 = vmatprep.subr.bf16.mxu0 0
      %486 = vmatpush1.bf16.msra.mxu0 0
      %487 = vmatprep.subr.bf16.mxu0 0
      %488 = vmatpush1.bf16.msra.mxu0 0
      %489 = vmatprep.subr.bf16.mxu0 0
      %490 = vmatpush1.bf16.msra.mxu0 0
      %491 = vmatprep.subr.bf16.mxu0 0
      %492 = vmatpush1.bf16.msra.mxu0 0
      %493 = vmatprep.subr.bf16.mxu0 0
      %494 = vmatpush1.bf16.msra.mxu0 0
      %495 = vmatprep.mubr.bf16.mxu0 0
      %496 = vmatmul.mubr.bf16.gmra.mrb[0].mxu0 %v455
      %v497 = vpop.f32.mrb[0].mxu0
      %v498 = vadd.f32 %v448, %v497
      %v499 = vpop.f32.mrb[0].mxu0
      %v500 = vadd.f32 %v450, %v499
      %v501 = vpop.f32.mrb[0].mxu0
      %v502 = vpop.f32.mrb[0].mxu0
      %503 = vdwg.mxu0
      %v504 = vpack.c.bf16 %v396, %v396
      %v505 = vpack.c.bf16 %v397, %v397
      %v507 = vsel %vm402, %v336, 0
      %v510 = vsel %vm406, %v504, 0
      %v513 = vsel %vm406, %v505, 0
      %515 = vmatprep.subr.bf16.mxu0 %v513
      %516 = vmatpush1.bf16.msra.mxu0 %v510
      %517 = vmatprep.subr.bf16.mxu0 0
      %518 = vmatpush1.bf16.msra.mxu0 0
      %519 = vmatprep.subr.bf16.mxu0 0
      %520 = vmatpush1.bf16.msra.mxu0 0
      %521 = vmatprep.subr.bf16.mxu0 0
      %522 = vmatpush1.bf16.msra.mxu0 0
      %523 = vmatprep.subr.bf16.mxu0 0
      %524 = vmatpush1.bf16.msra.mxu0 0
      %525 = vmatprep.subr.bf16.mxu0 0
      %526 = vmatpush1.bf16.msra.mxu0 0
      %527 = vmatprep.subr.bf16.mxu0 0
      %528 = vmatpush1.bf16.msra.mxu0 0
      %529 = vmatprep.subr.bf16.mxu0 0
      %530 = vmatpush1.bf16.msra.mxu0 0
      %531 = vmatprep.subr.bf16.mxu0 0
      %532 = vmatpush1.bf16.msra.mxu0 0
      %533 = vmatprep.subr.bf16.mxu0 0
      %534 = vmatpush1.bf16.msra.mxu0 0
      %535 = vmatprep.subr.bf16.mxu0 0
      %536 = vmatpush1.bf16.msra.mxu0 0
      %537 = vmatprep.subr.bf16.mxu0 0
      %538 = vmatpush1.bf16.msra.mxu0 0
      %539 = vmatprep.subr.bf16.mxu0 0
      %540 = vmatpush1.bf16.msra.mxu0 0
      %541 = vmatprep.subr.bf16.mxu0 0
      %542 = vmatpush1.bf16.msra.mxu0 0
      %543 = vmatprep.subr.bf16.mxu0 0
      %544 = vmatpush1.bf16.msra.mxu0 0
      %545 = vmatprep.subr.bf16.mxu0 0
      %546 = vmatpush1.bf16.msra.mxu0 0
      %547 = vmatprep.mubr.bf16.mxu0 0
      %548 = vmatmul.mubr.bf16.gmra.mrb[0].mxu0 %v507
      %v549 = vpop.f32.mrb[0].mxu0
      %v550 = vadd.f32 0.0, %v549
      %v551 = vpop.f32.mrb[0].mxu0
      %v552 = vadd.f32 0.0, %v551
      %v553 = vpop.f32.mrb[0].mxu0
      %v554 = vpop.f32.mrb[0].mxu0
      %555 = vdwg.mxu0
      %v556 = vadd.f32 %v498, %v550
      %v557 = vadd.f32 %v500, %v552
      %v558 = vpack.c.bf16 %v556, %v556
      %v559 = vpack.c.bf16 %v557, %v557
      %v562 = vunpack.c.l.b16 %v558
      %v563 = vunpack.c.l.b16 %v559
      %v564 = vpack.c.b16 %v563, %v562
      %566 = vst [vmem:[%s318] sm:$0xff] %v564
      %v567 = vadd.f32 %v556, 0.0
      %v568 = vmul.f32 %v556, %v556
      %v569 = vadd.f32 %v568, 0.0
      %v570 = vadd.f32 %v567, %v557
      %v571 = vmul.f32 %v557, %v557
      %v572 = vadd.f32 %v569, %v571
      %573 = vst [vmem:[%s322] sm:$0xff] %v570
      %574 = vst [vmem:[%s326] sm:$0xff] %v572
      %p575 = scmp.lt.s32.totalorder %s20, 1
      %s576 = scalar_select %p575, %s20, 1
      %s577 = smul.addr %s576, 2
      %s578 = smul.addr %s577, 4
      %s579 = scalar_lea.vmem %s6, %s578
      %p580 = scmp.lt.s32.totalorder %s20, 1
      %s581 = scalar_select %p580, %s20, 1
      %s582 = smul.addr %s581, 8
      %s583 = scalar_lea.vmem %s7, %s582
      %p584 = scmp.lt.s32.totalorder %s20, 1
      %s585 = scalar_select %p584, %s20, 1
      %s586 = smul.addr %s585, 8
      %s587 = scalar_lea.vmem %s8, %s586
      // Predicated region
      $region45: #{res_block2d_forward.4} parent=43 // pred_check
        %p588 = pneg %p169
      $region46: #{res_block2d_forward.4} parent=43 // pred_check_branch
        %590 = sbr.rel (%p588) target = $region48
      $region47: #{res_block2d_forward.4} parent=43 // pred_region
        _
      $region48: #{res_block2d_forward.4} parent=43 // pred_fallthru
        _
      // Predicated region
      $region49: #{res_block2d_forward.4} parent=43 // pred_check
        %p591 = pneg %p195
      $region50: #{res_block2d_forward.4} parent=43 // pred_check_branch
        %593 = sbr.rel (%p591) target = $region52
      $region51: #{res_block2d_forward.4} parent=43 // pred_region
        _
      $region52: #{res_block2d_forward.4} parent=43 // pred_fallthru
        _
      // Predicated region
      $region53: #{res_block2d_forward.4} parent=43 // pred_check
        %p594 = pneg %p221
      $region54: #{res_block2d_forward.4} parent=43 // pred_check_branch
        %596 = sbr.rel (%p594) target = $region56
      $region55: #{res_block2d_forward.4} parent=43 // pred_region
        _
      $region56: #{res_block2d_forward.4} parent=43 // pred_fallthru
        _
    $region44: #{res_block2d_forward.4} parent=5 // pred_fallthru
      _
    %p597 = scmp.le.s32.totalorder 2, %s15
    // Predicated region
    $region57: #{res_block2d_forward.4} parent=5 // pred_check
      %p598 = pneg %p597
    $region58: #{res_block2d_forward.4} parent=5 // pred_check_branch
      %600 = sbr.rel (%p598) target = $region60
    $region59: #{res_block2d_forward.4} parent=5 // pred_region
      %s601 = ssub.s32 %s15, 2
      // Predicated region
      $region61: #{res_block2d_forward.4} parent=59 // pred_check
        %p602 = pneg %p175
      $region62: #{res_block2d_forward.4} parent=59 // pred_check_branch
        %604 = sbr.rel (%p602) target = $region64
      $region63: #{res_block2d_forward.4} parent=59 // pred_region
        %p605 = scmp.lt.s32.totalorder %s21, 1
        %s606 = scalar_select %p605, %s21, 1
        %s607 = smul.addr %s606, 2
        %s608 = smul.addr %s607, 4
        %s609 = scalar_lea.vmem %s6, %s608
      $region64: #{res_block2d_forward.4} parent=59 // pred_fallthru
        _
      // Predicated region
      $region65: #{res_block2d_forward.4} parent=59 // pred_check
        %p610 = pneg %p201
      $region66: #{res_block2d_forward.4} parent=59 // pred_check_branch
        %612 = sbr.rel (%p610) target = $region68
      $region67: #{res_block2d_forward.4} parent=59 // pred_region
        %p613 = scmp.lt.s32.totalorder %s21, 1
        %s614 = scalar_select %p613, %s21, 1
        %s615 = smul.addr %s614, 8
        %s616 = scalar_lea.vmem %s7, %s615
      $region68: #{res_block2d_forward.4} parent=59 // pred_fallthru
        _
      // Predicated region
      $region69: #{res_block2d_forward.4} parent=59 // pred_check
        %p617 = pneg %p227
      $region70: #{res_block2d_forward.4} parent=59 // pred_check_branch
        %619 = sbr.rel (%p617) target = $region72
      $region71: #{res_block2d_forward.4} parent=59 // pred_region
        %p620 = scmp.lt.s32.totalorder %s21, 1
        %s621 = scalar_select %p620, %s21, 1
        %s622 = smul.addr %s621, 8
        %s623 = scalar_lea.vmem %s8, %s622
      $region72: #{res_block2d_forward.4} parent=59 // pred_fallthru
        _
    $region60: #{res_block2d_forward.4} parent=5 // pred_fallthru
      _
  $region6: #{res_block2d_forward.4} parent=0 // loop_footer
    %s19 = sadd.s32 1, %s15
  $region7: #{res_block2d_forward.4} parent=0 // loop_footer_branch
    %14 = sbr.rel target = $region3
  $region8: #{res_block2d_forward.4} parent=0 // loop_exit
    _

// kernel: res_block2d_forward.3
$region0: #{res_block2d_forward.3}
  #allocation0 [shape = 'u32[]', space=smem, size = 0x4, offset = 0x4, fixed_abs, tag = 'smem constant byte address 0x4 - core index']
  #allocation1 [shape = 'u32[144,128]{1,0:T(1,128)}', space=vmem, size = 0x12000, scoped, tag = 'internal scratch']
  %s0 = inlined_call_operand.vmem [shape: f32[2,4,256], index: 0, kind: input, shape index: {}]
  %s1 = inlined_call_operand.vmem [shape: f32[4,1], index: 1, kind: input, shape index: {}]
  %s2 = inlined_call_operand.vmem [shape: f32[4,1], index: 2, kind: input, shape index: {}]
  %s3 = inlined_call_operand.vmem [shape: bf16[3,8,4], index: 3, kind: input, shape index: {}]
  %s4 = inlined_call_operand.vmem [shape: f32[1,256], index: 4, kind: input, shape index: {}]
  %s5 = inlined_call_operand.vmem [shape: f32[1,256], index: 5, kind: input, shape index: {}]
  %s6 = inlined_call_operand.vmem [shape: bf16[2,8,256], index: 6, kind: output, shape index: {0}]
  %s7 = inlined_call_operand.vmem [shape: f32[2,8,128], index: 7, kind: output, shape index: {1}]
  %s8 = inlined_call_operand.vmem [shape: f32[2,8,128], index: 8, kind: output, shape index: {2}]
  %9 = xla_tuple %s6, %s7, %s8
  %s10 = sld [smem:[#allocation0]]
  $region73: #{res_block2d_forward.3} parent=0
    _
  %s12 = ssub.s32 1, %s10
  %s13 = scalar_select 0, %s12, %s10
  loop: start=0, step=1, limit=4
  $region2: #{res_block2d_forward.3} parent=0 // loop_pre_header
    _
  $region3: #{res_block2d_forward.3} parent=0 // loop_header
    %s15 = sphi 0, %s19
    %p16 = scmp.ge.s32.totalorder %s15, 4
    %s25 = sphi 0, %s27
    %s28 = sphi 0, %s25
    %s29 = sphi 0, %s28
    %s45 = sphi 0, %s29
    %s49 = sphi 0, %s49
    %s51 = sphi 0, %s49
    %s52 = sphi 0, %s51
    %s66 = sphi 0, %s52
    %s70 = sphi 0, %s70
    %s72 = sphi 0, %s70
    %s73 = sphi 0, %s72
    %s87 = sphi 0, %s73
    %s91 = sphi 0, %s91
    %s93 = sphi 0, %s91
    %s94 = sphi 0, %s93
    %s108 = sphi 0, %s94
    %s112 = sphi 0, %s112
    %s114 = sphi 0, %s112
    %s115 = sphi 0, %s114
    %s129 = sphi 0, %s115
    %s133 = sphi 0, %s133
    %s135 = sphi 0, %s133
    %s136 = sphi 0, %s135
    %s150 = sphi 0, %s136
    %s156 = sphi 0, %s158
    %s159 = sphi 0, %s156
    %s160 = sphi 0, %s159
    %s176 = sphi 0, %s160
    %s182 = sphi 0, %s184
    %s185 = sphi 0, %s182
    %s186 = sphi 0, %s185
    %s202 = sphi 0, %s186
    %s208 = sphi 0, %s210
    %s211 = sphi 0, %s208
    %s212 = sphi 0, %s211
    %s228 = sphi 0, %s212
  $region4: #{res_block2d_forward.3} parent=0 // loop_header_branch
    %18 = sbr.rel (%p16) target = $region8
  $region5: #{res_block2d_forward.3} parent=0 // loop_body
    %s20 = ssub.s32 %s15, 1
    %s21 = ssub.s32 %s15, 2
    %s22 = sadd.s32 %s15, 1
    %s23 = ssub.s32 %s15, %s22
    %p24 = scmp.eq.s32.totalorder %s23, 0
    %s26 = sadd.s32 %s25, 1
    %s27 = scalar_select %p24, %s25, %s26
    %p30 = pneg %p24
    %p31 = scmp.eq.s32.totalorder %s15, 1
    %p32 = por %p30, %p31
    %p33 = scmp.ne.s32.totalorder %s25, %s28
    %p34 = scmp.eq.s32.totalorder %s15, 0
    %p35 = por %p33, %p34
    %p36 = scmp.ne.s32.totalorder %s25, %s28
    %p37 = scmp.eq.s32.totalorder %s20, 1
    %p38 = por %p36, %p37
    %p39 = scmp.ne.s32.totalorder %s28, %s29
    %p40 = scmp.eq.s32.totalorder %s20, 0
    %p41 = por %p39, %p40
    %p42 = scmp.ne.s32.totalorder %s28, %s29
    %p43 = scmp.eq.s32.totalorder %s21, 1
    %p44 = por %p42, %p43
    %p46 = scmp.ne.s32.totalorder %s29, %s45
    %p47 = scmp.eq.s32.totalorder %s21, 0
    %p48 = por %p46, %p47
    %s50 = sadd.s32 %s49, 1
    %p53 = scmp.eq.s32.totalorder %s15, 1
    %p54 = scmp.ne.s32.totalorder %s49, %s51
    %p55 = scmp.eq.s32.totalorder %s15, 0
    %p56 = por %p54, %p55
    %p57 = scmp.ne.s32.totalorder %s49, %s51
    %p58 = scmp.eq.s32.totalorder %s20, 1
    %p59 = por %p57, %p58
    %p60 = scmp.ne.s32.totalorder %s51, %s52
    %p61 = scmp.eq.s32.totalorder %s20, 0
    %p62 = por %p60, %p61
    %p63 = scmp.ne.s32.totalorder %s51, %s52
    %p64 = scmp.eq.s32.totalorder %s21, 1
    %p65 = por %p63, %p64
    %p67 = scmp.ne.s32.totalorder %s52, %s66
    %p68 = scmp.eq.s32.totalorder %s21, 0
    %p69 = por %p67, %p68
    %s71 = sadd.s32 %s70, 1
    %p74 = scmp.eq.s32.totalorder %s15, 1
    %p75 = scmp.ne.s32.totalorder %s70, %s72
    %p76 = scmp.eq.s32.totalorder %s15, 0
    %p77 = por %p75, %p76
    %p78 = scmp.ne.s32.totalorder %s70, %s72
    %p79 = scmp.eq.s32.totalorder %s20, 1
    %p80 = por %p78, %p79
    %p81 = scmp.ne.s32.totalorder %s72, %s73
    %p82 = scmp.eq.s32.totalorder %s20, 0
    %p83 = por %p81, %p82
    %p84 = scmp.ne.s32.totalorder %s72, %s73
    %p85 = scmp.eq.s32.totalorder %s21, 1
    %p86 = por %p84, %p85
    %p88 = scmp.ne.s32.totalorder %s73, %s87
    %p89 = scmp.eq.s32.totalorder %s21, 0
    %p90 = por %p88, %p89
    %s92 = sadd.s32 %s91, 1
    %p95 = scmp.eq.s32.totalorder %s15, 1
    %p96 = scmp.ne.s32.totalorder %s91, %s93
    %p97 = scmp.eq.s32.totalorder %s15, 0
    %p98 = por %p96, %p97
    %p99 = scmp.ne.s32.totalorder %s91, %s93
    %p100 = scmp.eq.s32.totalorder %s20, 1
    %p101 = por %p99, %p100
    %p102 = scmp.ne.s32.totalorder %s93, %s94
    %p103 = scmp.eq.s32.totalorder %s20, 0
    %p104 = por %p102, %p103
    %p105 = scmp.ne.s32.totalorder %s93, %s94
    %p106 = scmp.eq.s32.totalorder %s21, 1
    %p107 = por %p105, %p106
    %p109 = scmp.ne.s32.totalorder %s94, %s108
    %p110 = scmp.eq.s32.totalorder %s21, 0
    %p111 = por %p109, %p110
    %s113 = sadd.s32 %s112, 1
    %p116 = scmp.eq.s32.totalorder %s15, 1
    %p117 = scmp.ne.s32.totalorder %s112, %s114
    %p118 = scmp.eq.s32.totalorder %s15, 0
    %p119 = por %p117, %p118
    %p120 = scmp.ne.s32.totalorder %s112, %s114
    %p121 = scmp.eq.s32.totalorder %s20, 1
    %p122 = por %p120, %p121
    %p123 = scmp.ne.s32.totalorder %s114, %s115
    %p124 = scmp.eq.s32.totalorder %s20, 0
    %p125 = por %p123, %p124
    %p126 = scmp.ne.s32.totalorder %s114, %s115
    %p127 = scmp.eq.s32.totalorder %s21, 1
    %p128 = por %p126, %p127
    %p130 = scmp.ne.s32.totalorder %s115, %s129
    %p131 = scmp.eq.s32.totalorder %s21, 0
    %p132 = por %p130, %p131
    %s134 = sadd.s32 %s133, 1
    %p137 = scmp.eq.s32.totalorder %s15, 1
    %p138 = scmp.ne.s32.totalorder %s133, %s135
    %p139 = scmp.eq.s32.totalorder %s15, 0
    %p140 = por %p138, %p139
    %p141 = scmp.ne.s32.totalorder %s133, %s135
    %p142 = scmp.eq.s32.totalorder %s20, 1
    %p143 = por %p141, %p142
    %p144 = scmp.ne.s32.totalorder %s135, %s136
    %p145 = scmp.eq.s32.totalorder %s20, 0
    %p146 = por %p144, %p145
    %p147 = scmp.ne.s32.totalorder %s135, %s136
    %p148 = scmp.eq.s32.totalorder %s21, 1
    %p149 = por %p147, %p148
    %p151 = scmp.ne.s32.totalorder %s136, %s150
    %p152 = scmp.eq.s32.totalorder %s21, 0
    %p153 = por %p151, %p152
    %s154 = ssub.s32 %s15, %s22
    %p155 = scmp.eq.s32.totalorder %s154, 0
    %s157 = sadd.s32 %s156, 1
    %s158 = scalar_select %p155, %s156, %s157
    %p161 = pneg %p155
    %p162 = scmp.eq.s32.totalorder %s15, 1
    %p163 = por %p161, %p162
    %p164 = scmp.ne.s32.totalorder %s156, %s159
    %p165 = scmp.eq.s32.totalorder %s15, 0
    %p166 = por %p164, %p165
    %p167 = scmp.ne.s32.totalorder %s156, %s159
    %p168 = scmp.eq.s32.totalorder %s20, 1
    %p169 = por %p167, %p168
    %p170 = scmp.ne.s32.totalorder %s159, %s160
    %p171 = scmp.eq.s32.totalorder %s20, 0
    %p172 = por %p170, %p171
    %p173 = scmp.ne.s32.totalorder %s159, %s160
    %p174 = scmp.eq.s32.totalorder %s21, 1
    %p175 = por %p173, %p174
    %p177 = scmp.ne.s32.totalorder %s160, %s176
    %p178 = scmp.eq.s32.totalorder %s21, 0
    %p179 = por %p177, %p178
    %s180 = ssub.s32 %s15, %s22
    %p181 = scmp.eq.s32.totalorder %s180, 0
    %s183 = sadd.s32 %s182, 1
    %s184 = scalar_select %p181, %s182, %s183
    %p187 = pneg %p181
    %p188 = scmp.eq.s32.totalorder %s15, 1
    %p189 = por %p187, %p188
    %p190 = scmp.ne.s32.totalorder %s182, %s185
    %p191 = scmp.eq.s32.totalorder %s15, 0
    %p192 = por %p190, %p191
    %p193 = scmp.ne.s32.totalorder %s182, %s185
    %p194 = scmp.eq.s32.totalorder %s20, 1
    %p195 = por %p193, %p194
    %p196 = scmp.ne.s32.totalorder %s185, %s186
    %p197 = scmp.eq.s32.totalorder %s20, 0
    %p198 = por %p196, %p197
    %p199 = scmp.ne.s32.totalorder %s185, %s186
    %p200 = scmp.eq.s32.totalorder %s21, 1
    %p201 = por %p199, %p200
    %p203 = scmp.ne.s32.totalorder %s186, %s202
    %p204 = scmp.eq.s32.totalorder %s21, 0
    %p205 = por %p203, %p204
    %s206 = ssub.s32 %s15, %s22
    %p207 = scmp.eq.s32.totalorder %s206, 0
    %s209 = sadd.s32 %s208, 1
    %s210 = scalar_select %p207, %s208, %s209
    %p213 = pneg %p207
    %p214 = scmp.eq.s32.totalorder %s15, 1
    %p215 = por %p213, %p214
    %p216 = scmp.ne.s32.totalorder %s208, %s211
    %p217 = scmp.eq.s32.totalorder %s15, 0
    %p218 = por %p216, %p217
    %p219 = scmp.ne.s32.totalorder %s208, %s211
    %p220 = scmp.eq.s32.totalorder %s20, 1
    %p221 = por %p219, %p220
    %p222 = scmp.ne.s32.totalorder %s211, %s212
    %p223 = scmp.eq.s32.totalorder %s20, 0
    %p224 = por %p222, %p223
    %p225 = scmp.ne.s32.totalorder %s211, %s212
    %p226 = scmp.eq.s32.totalorder %s21, 1
    %p227 = por %p225, %p226
    %p229 = scmp.ne.s32.totalorder %s212, %s228
    %p230 = scmp.eq.s32.totalorder %s21, 0
    %p231 = por %p229, %p230
    %p232 = scmp.le.s32.totalorder 1, %s15
    %p233 = scmp.lt.s32.totalorder %s15, 3
    %p234 = pnand %p232, %p233
    %p235 = pneg %p234
    // Predicated region
    $region9: #{res_block2d_forward.3} parent=5 // pred_check
      _
    $region10: #{res_block2d_forward.3} parent=5 // pred_check_branch
      %237 = sbr.rel (%p234) target = $region12
    $region11: #{res_block2d_forward.3} parent=5 // pred_region
      %s238 = ssub.s32 %s15, 1
      // Predicated region
      $region13: #{res_block2d_forward.3} parent=11 // pred_check
        %p239 = pneg %p62
      $region14: #{res_block2d_forward.3} parent=11 // pred_check_branch
        %241 = sbr.rel (%p239) target = $region16
      $region15: #{res_block2d_forward.3} parent=11 // pred_region
        _
      $region16: #{res_block2d_forward.3} parent=11 // pred_fallthru
        _
      // Predicated region
      $region17: #{res_block2d_forward.3} parent=11 // pred_check
        %p242 = pneg %p83
      $region18: #{res_block2d_forward.3} parent=11 // pred_check_branch
        %244 = sbr.rel (%p242) target = $region20
      $region19: #{res_block2d_forward.3} parent=11 // pred_region
        _
      $region20: #{res_block2d_forward.3} parent=11 // pred_fallthru
        _
      // Predicated region
      $region21: #{res_block2d_forward.3} parent=11 // pred_check
        %p245 = pneg %p104
      $region22: #{res_block2d_forward.3} parent=11 // pred_check_branch
        %247 = sbr.rel (%p245) target = $region24
      $region23: #{res_block2d_forward.3} parent=11 // pred_region
        _
      $region24: #{res_block2d_forward.3} parent=11 // pred_fallthru
        _
      // Predicated region
      $region25: #{res_block2d_forward.3} parent=11 // pred_check
        %p248 = pneg %p125
      $region26: #{res_block2d_forward.3} parent=11 // pred_check_branch
        %250 = sbr.rel (%p248) target = $region28
      $region27: #{res_block2d_forward.3} parent=11 // pred_region
        _
      $region28: #{res_block2d_forward.3} parent=11 // pred_fallthru
        _
      // Predicated region
      $region29: #{res_block2d_forward.3} parent=11 // pred_check
        %p251 = pneg %p146
      $region30: #{res_block2d_forward.3} parent=11 // pred_check_branch
        %253 = sbr.rel (%p251) target = $region32
      $region31: #{res_block2d_forward.3} parent=11 // pred_region
        _
      $region32: #{res_block2d_forward.3} parent=11 // pred_fallthru
        _
    $region12: #{res_block2d_forward.3} parent=5 // pred_fallthru
      _
    %p254 = scmp.lt.s32.totalorder %s15, 2
    // Predicated region
    $region33: #{res_block2d_forward.3} parent=5 // pred_check
      %p255 = pneg %p254
    $region34: #{res_block2d_forward.3} parent=5 // pred_check_branch
      %257 = sbr.rel (%p255) target = $region36
    $region35: #{res_block2d_forward.3} parent=5 // pred_region
      // Predicated region
      $region37: #{res_block2d_forward.3} parent=35 // pred_check
        %p258 = pneg %p35
      $region38: #{res_block2d_forward.3} parent=35 // pred_check_branch
        %260 = sbr.rel (%p258) target = $region40
      $region39: #{res_block2d_forward.3} parent=35 // pred_region
        %p261 = scmp.lt.s32.totalorder %s15, 1
        %s262 = scalar_select %p261, %s15, 1
        %s263 = smul.addr %s262, 2
        %s264 = smul.addr %s263, 4
        %s265 = scalar_lea.vmem %s0, %s264
      $region40: #{res_block2d_forward.3} parent=35 // pred_fallthru
        _
    $region36: #{res_block2d_forward.3} parent=5 // pred_fallthru
      _
    %p266 = scmp.le.s32.totalorder 1, %s15
    %p267 = scmp.lt.s32.totalorder %s15, 3
    %p268 = pnand %p266, %p267
    %p269 = pneg %p268
    // Predicated region
    $region41: #{res_block2d_forward.3} parent=5 // pred_check
      _
    $region42: #{res_block2d_forward.3} parent=5 // pred_check_branch
      %271 = sbr.rel (%p268) target = $region44
    $region43: #{res_block2d_forward.3} parent=5 // pred_region
      %s272 = ssub.s32 %s15, 1
      %p273 = scmp.lt.s32.totalorder %s20, 1
      %s274 = scalar_select %p273, %s20, 1
      %s275 = smul.addr %s274, 2
      %s276 = smul.addr %s275, 4
      %s277 = scalar_lea.vmem %s0, %s276
      %p278 = pneg %p41
      %p279 = pneg %p38
      %p280 = pneg %p62
      %p281 = pneg %p59
      %p282 = pneg %p83
      %p283 = pneg %p80
      %p284 = pneg %p104
      %p285 = pneg %p101
      %p286 = pneg %p125
      %p287 = pneg %p122
      %p288 = pneg %p146
      %p289 = pneg %p143
      %p290 = pneg %p172
      %p291 = pneg %p169
      %p292 = scmp.lt.s32.totalorder %s20, 1
      %s293 = scalar_select %p292, %s20, 1
      %s294 = smul.addr %s293, 2
      %s295 = smul.addr %s294, 4
      %s296 = scalar_lea.vmem %s6, %s295
      %p297 = pneg %p198
      %p298 = pneg %p195
      %p299 = scmp.lt.s32.totalorder %s20, 1
      %s300 = scalar_select %p299, %s20, 1
      %s301 = smul.addr %s300, 8
      %s302 = scalar_lea.vmem %s7, %s301
      %p303 = pneg %p224
      %p304 = pneg %p221
      %p305 = scmp.lt.s32.totalorder %s20, 1
      %s306 = scalar_select %p305, %s20, 1
      %s307 = smul.addr %s306, 8
      %s308 = scalar_lea.vmem %s8, %s307
      %p309 = scmp.lt.s32.totalorder %s20, 1
      %s310 = scalar_select %p309, %s20, 1
      %s311 = smul.addr %s310, 2
      %s312 = smul.addr %s311, 4
      %s313 = scalar_lea.vmem %s0, %s312
      %p314 = scmp.lt.s32.totalorder %s20, 1
      %s315 = scalar_select %p314, %s20, 1
      %s316 = smul.addr %s315, 2
      %s317 = smul.addr %s316, 4
      %s318 = scalar_lea.vmem %s6, %s317
      %p319 = scmp.lt.s32.totalorder %s20, 1
      %s320 = scalar_select %p319, %s20, 1
      %s321 = smul.addr %s320, 8
      %s322 = scalar_lea.vmem %s7, %s321
      %p323 = scmp.lt.s32.totalorder %s20, 1
      %s324 = scalar_select %p323, %s20, 1
      %s325 = smul.addr %s324, 8
      %s326 = scalar_lea.vmem %s8, %s325
      %v328 = vld [vmem:[%s1] sm:$0xf]
      %v329 = vld [vmem:[%s2] sm:$0xf]
      %v330 = vld [vmem:[%s4] sm:$0x3]
      %v331 = vld [vmem:[%s5] sm:$0x3]
      %v332 = vld [vmem:[%s3] sm:$0xf]
      %s333 = scalar_lea.vmem %s3, 4
      %v334 = vld [vmem:[%s333] sm:$0xf]
      %s335 = scalar_lea.vmem %s3, 8
      %v336 = vld [vmem:[%s335] sm:$0xf]
      %v337 = vld [vmem:[%s313] sm:$0xff]
      %339 = vset.pattern.permute.xlu0 0
      %340 = vperm.xlu0 %339, %v328
      %v341 = vpop.permute.xlu0 %340
      %v343 = vunpack.c.l.s4 839922192
      %v344 = vunpack.c.0.s8 %v343
      %v345 = vlaneseq
      %v346 = vshrl.u32 %v345, 7
      %v347 = vsub.s32 %v344, %v346
      %v348 = vrot.slane %v341, %v347
      %v350 = vmul.f32 %v337, %v348
      %352 = vset.pattern.permute.xlu0 0
      %353 = vperm.xlu0 %352, %v329
      %v354 = vpop.permute.xlu0 %353
      %v356 = vunpack.c.l.s4 839922192
      %v357 = vunpack.c.0.s8 %v356
      %v358 = vlaneseq
      %v359 = vshrl.u32 %v358, 7
      %v360 = vsub.s32 %v357, %v359
      %v361 = vrot.slane %v354, %v360
      %v363 = vadd.f32 %v350, %v361
      %v365 = vcombine.high %v363, %v363
      %367 = vrot.lane.b32.xlu0 %v363, 16
      %v368 = vpop.permute.xlu0 %367
      %369 = vrot.lane.b32.xlu0 %v365, 16
      %v370 = vpop.permute.xlu0 %369
      %v371 = vlaneseq
      %v372 = vand.u32 %v371, 127
      %vm373 = vcmp.lt.s32.totalorder %v372, 16
      %v374 = vsel %vm373, %v368, %v370
      %v375 = vsel %vm373, %v370, %v368
      %v377 = vlaneseq
      %v378 = vshrl.u32 %v377, 7
      %v379 = vsub.s32 0, %v378
      %v380 = vrot.slane %v330, %v379
      %v381 = vlaneseq
      %v382 = vshrl.u32 %v381, 7
      %v383 = vsub.s32 1, %v382
      %v384 = vrot.slane %v330, %v383
      %v387 = vmul.f32 %v375, %v380
      %v388 = vmul.f32 %v374, %v384
      %389 = vrot.lane.b32.xlu0 %v363, 112
      %v390 = vpop.permute.xlu0 %389
      %391 = vrot.lane.b32.xlu0 %v365, 112
      %v392 = vpop.permute.xlu0 %391
      %vm393 = vcmp.lt.s32.totalorder %v372, 112
      %v394 = vsel %vm393, %v390, %v392
      %v395 = vsel %vm393, %v392, %v390
      %v397 = vlaneseq
      %v398 = vshrl.u32 %v397, 7
      %v399 = vsub.s32 0, %v398
      %v400 = vrot.slane %v331, %v399
      %v401 = vlaneseq
      %v402 = vshrl.u32 %v401, 7
      %v403 = vsub.s32 1, %v402
      %v404 = vrot.slane %v331, %v403
      %v407 = vmul.f32 %v394, %v400
      %v408 = vmul.f32 %v395, %v404
      %v409 = vpack.c.bf16 %v363, %v363
      %v410 = vpack.c.bf16 %v365, %v365
      %v411 = vpack.c.bf16 %v387, %v387
      %v412 = vpack.c.bf16 %v388, %v388
      %vm413 = vcmask 31744
      %v415 = vsel %vm413, %v332, 0
      %vm417 = vcmask 1041408
      %v419 = vsel %vm417, %v411, 0
      %v422 = vsel %vm417, %v412, 0
      %424 = vmatprep.subr.bf16.mxu0 %v422
      %425 = vmatpush1.bf16.msra.mxu0 %v419
      %426 = vmatprep.subr.bf16.mxu0 0
      %427 = vmatpush1.bf16.msra.mxu0 0
      %428 = vmatprep.subr.bf16.mxu0 0
      %429 = vmatpush1.bf16.msra.mxu0 0
      %430 = vmatprep.subr.bf16.mxu0 0
      %431 = vmatpush1.bf16.msra.mxu0 0
      %432 = vmatprep.subr.bf16.mxu0 0
      %433 = vmatpush1.bf16.msra.mxu0 0
      %434 = vmatprep.subr.bf16.mxu0 0
      %435 = vmatpush1.bf16.msra.mxu0 0
      %436 = vmatprep.subr.bf16.mxu0 0
      %437 = vmatpush1.bf16.msra.mxu0 0
      %438 = vmatprep.subr.bf16.mxu0 0
      %439 = vmatpush1.bf16.msra.mxu0 0
      %440 = vmatprep.subr.bf16.mxu0 0
      %441 = vmatpush1.bf16.msra.mxu0 0
      %442 = vmatprep.subr.bf16.mxu0 0
      %443 = vmatpush1.bf16.msra.mxu0 0
      %444 = vmatprep.subr.bf16.mxu0 0
      %445 = vmatpush1.bf16.msra.mxu0 0
      %446 = vmatprep.subr.bf16.mxu0 0
      %447 = vmatpush1.bf16.msra.mxu0 0
      %448 = vmatprep.subr.bf16.mxu0 0
      %449 = vmatpush1.bf16.msra.mxu0 0
      %450 = vmatprep.subr.bf16.mxu0 0
      %451 = vmatpush1.bf16.msra.mxu0 0
      %452 = vmatprep.subr.bf16.mxu0 0
      %453 = vmatpush1.bf16.msra.mxu0 0
      %454 = vmatprep.subr.bf16.mxu0 0
      %455 = vmatpush1.bf16.msra.mxu0 0
      %456 = vmatprep.mubr.bf16.mxu0 0
      %457 = vmatmul.mubr.bf16.gmra.mrb[0].mxu0 %v415
      %v458 = vpop.f32.mrb[0].mxu0
      %v459 = vadd.f32 0.0, %v458
      %v460 = vpop.f32.mrb[0].mxu0
      %v461 = vadd.f32 0.0, %v460
      %v462 = vpop.f32.mrb[0].mxu0
      %v463 = vpop.f32.mrb[0].mxu0
      %464 = vdwg.mxu0
      %v466 = vsel %vm413, %v334, 0
      %v469 = vsel %vm417, %v409, 0
      %v472 = vsel %vm417, %v410, 0
      %474 = vmatprep.subr.bf16.mxu0 %v472
      %475 = vmatpush1.bf16.msra.mxu0 %v469
      %476 = vmatprep.subr.bf16.mxu0 0
      %477 = vmatpush1.bf16.msra.mxu0 0
      %478 = vmatprep.subr.bf16.mxu0 0
      %479 = vmatpush1.bf16.msra.mxu0 0
      %480 = vmatprep.subr.bf16.mxu0 0
      %481 = vmatpush1.bf16.msra.mxu0 0
      %482 = vmatprep.subr.bf16.mxu0 0
      %483 = vmatpush1.bf16.msra.mxu0 0
      %484 = vmatprep.subr.bf16.mxu0 0
      %485 = vmatpush1.bf16.msra.mxu0 0
      %486 = vmatprep.subr.bf16.mxu0 0
      %487 = vmatpush1.bf16.msra.mxu0 0
      %488 = vmatprep.subr.bf16.mxu0 0
      %489 = vmatpush1.bf16.msra.mxu0 0
      %490 = vmatprep.subr.bf16.mxu0 0
      %491 = vmatpush1.bf16.msra.mxu0 0
      %492 = vmatprep.subr.bf16.mxu0 0
      %493 = vmatpush1.bf16.msra.mxu0 0
      %494 = vmatprep.subr.bf16.mxu0 0
      %495 = vmatpush1.bf16.msra.mxu0 0
      %496 = vmatprep.subr.bf16.mxu0 0
      %497 = vmatpush1.bf16.msra.mxu0 0
      %498 = vmatprep.subr.bf16.mxu0 0
      %499 = vmatpush1.bf16.msra.mxu0 0
      %500 = vmatprep.subr.bf16.mxu0 0
      %501 = vmatpush1.bf16.msra.mxu0 0
      %502 = vmatprep.subr.bf16.mxu0 0
      %503 = vmatpush1.bf16.msra.mxu0 0
      %504 = vmatprep.subr.bf16.mxu0 0
      %505 = vmatpush1.bf16.msra.mxu0 0
      %506 = vmatprep.mubr.bf16.mxu0 0
      %507 = vmatmul.mubr.bf16.gmra.mrb[0].mxu0 %v466
      %v508 = vpop.f32.mrb[0].mxu0
      %v509 = vadd.f32 %v459, %v508
      %v510 = vpop.f32.mrb[0].mxu0
      %v511 = vadd.f32 %v461, %v510
      %v512 = vpop.f32.mrb[0].mxu0
      %v513 = vpop.f32.mrb[0].mxu0
      %514 = vdwg.mxu0
      %v515 = vpack.c.bf16 %v407, %v407
      %v516 = vpack.c.bf16 %v408, %v408
      %v518 = vsel %vm413, %v336, 0
      %v521 = vsel %vm417, %v515, 0
      %v524 = vsel %vm417, %v516, 0
      %526 = vmatprep.subr.bf16.mxu0 %v524
      %527 = vmatpush1.bf16.msra.mxu0 %v521
      %528 = vmatprep.subr.bf16.mxu0 0
      %529 = vmatpush1.bf16.msra.mxu0 0
      %530 = vmatprep.subr.bf16.mxu0 0
      %531 = vmatpush1.bf16.msra.mxu0 0
      %532 = vmatprep.subr.bf16.mxu0 0
      %533 = vmatpush1.bf16.msra.mxu0 0
      %534 = vmatprep.subr.bf16.mxu0 0
      %535 = vmatpush1.bf16.msra.mxu0 0
      %536 = vmatprep.subr.bf16.mxu0 0
      %537 = vmatpush1.bf16.msra.mxu0 0
      %538 = vmatprep.subr.bf16.mxu0 0
      %539 = vmatpush1.bf16.msra.mxu0 0
      %540 = vmatprep.subr.bf16.mxu0 0
      %541 = vmatpush1.bf16.msra.mxu0 0
      %542 = vmatprep.subr.bf16.mxu0 0
      %543 = vmatpush1.bf16.msra.mxu0 0
      %544 = vmatprep.subr.bf16.mxu0 0
      %545 = vmatpush1.bf16.msra.mxu0 0
      %546 = vmatprep.subr.bf16.mxu0 0
      %547 = vmatpush1.bf16.msra.mxu0 0
      %548 = vmatprep.subr.bf16.mxu0 0
      %549 = vmatpush1.bf16.msra.mxu0 0
      %550 = vmatprep.subr.bf16.mxu0 0
      %551 = vmatpush1.bf16.msra.mxu0 0
      %552 = vmatprep.subr.bf16.mxu0 0
      %553 = vmatpush1.bf16.msra.mxu0 0
      %554 = vmatprep.subr.bf16.mxu0 0
      %555 = vmatpush1.bf16.msra.mxu0 0
      %556 = vmatprep.subr.bf16.mxu0 0
      %557 = vmatpush1.bf16.msra.mxu0 0
      %558 = vmatprep.mubr.bf16.mxu0 0
      %559 = vmatmul.mubr.bf16.gmra.mrb[0].mxu0 %v518
      %v560 = vpop.f32.mrb[0].mxu0
      %v561 = vadd.f32 0.0, %v560
      %v562 = vpop.f32.mrb[0].mxu0
      %v563 = vadd.f32 0.0, %v562
      %v564 = vpop.f32.mrb[0].mxu0
      %v565 = vpop.f32.mrb[0].mxu0
      %566 = vdwg.mxu0
      %v567 = vadd.f32 %v509, %v561
      %v568 = vadd.f32 %v511, %v563
      %v569 = vpack.c.bf16 %v567, %v567
      %v570 = vpack.c.bf16 %v568, %v568
      %v573 = vunpack.c.l.b16 %v569
      %v574 = vunpack.c.l.b16 %v570
      %v575 = vpack.c.b16 %v574, %v573
      %577 = vst [vmem:[%s318] sm:$0xff] %v575
      %v578 = vadd.f32 %v567, 0.0
      %v579 = vmul.f32 %v567, %v567
      %v580 = vadd.f32 %v579, 0.0
      %v581 = vadd.f32 %v578, %v568
      %v582 = vmul.f32 %v568, %v568
      %v583 = vadd.f32 %v580, %v582
      %584 = vst [vmem:[%s322] sm:$0xff] %v581
      %585 = vst [vmem:[%s326] sm:$0xff] %v583
      %p586 = scmp.lt.s32.totalorder %s20, 1
      %s587 = scalar_select %p586, %s20, 1
      %s588 = smul.addr %s587, 2
      %s589 = smul.addr %s588, 4
      %s590 = scalar_lea.vmem %s6, %s589
      %p591 = scmp.lt.s32.totalorder %s20, 1
      %s592 = scalar_select %p591, %s20, 1
      %s593 = smul.addr %s592, 8
      %s594 = scalar_lea.vmem %s7, %s593
      %p595 = scmp.lt.s32.totalorder %s20, 1
      %s596 = scalar_select %p595, %s20, 1
      %s597 = smul.addr %s596, 8
      %s598 = scalar_lea.vmem %s8, %s597
      // Predicated region
      $region45: #{res_block2d_forward.3} parent=43 // pred_check
        %p599 = pneg %p169
      $region46: #{res_block2d_forward.3} parent=43 // pred_check_branch
        %601 = sbr.rel (%p599) target = $region48
      $region47: #{res_block2d_forward.3} parent=43 // pred_region
        _
      $region48: #{res_block2d_forward.3} parent=43 // pred_fallthru
        _
      // Predicated region
      $region49: #{res_block2d_forward.3} parent=43 // pred_check
        %p602 = pneg %p195
      $region50: #{res_block2d_forward.3} parent=43 // pred_check_branch
        %604 = sbr.rel (%p602) target = $region52
      $region51: #{res_block2d_forward.3} parent=43 // pred_region
        _
      $region52: #{res_block2d_forward.3} parent=43 // pred_fallthru
        _
      // Predicated region
      $region53: #{res_block2d_forward.3} parent=43 // pred_check
        %p605 = pneg %p221
      $region54: #{res_block2d_forward.3} parent=43 // pred_check_branch
        %607 = sbr.rel (%p605) target = $region56
      $region55: #{res_block2d_forward.3} parent=43 // pred_region
        _
      $region56: #{res_block2d_forward.3} parent=43 // pred_fallthru
        _
    $region44: #{res_block2d_forward.3} parent=5 // pred_fallthru
      _
    %p608 = scmp.le.s32.totalorder 2, %s15
    // Predicated region
    $region57: #{res_block2d_forward.3} parent=5 // pred_check
      %p609 = pneg %p608
    $region58: #{res_block2d_forward.3} parent=5 // pred_check_branch
      %611 = sbr.rel (%p609) target = $region60
    $region59: #{res_block2d_forward.3} parent=5 // pred_region
      %s612 = ssub.s32 %s15, 2
      // Predicated region
      $region61: #{res_block2d_forward.3} parent=59 // pred_check
        %p613 = pneg %p175
      $region62: #{res_block2d_forward.3} parent=59 // pred_check_branch
        %615 = sbr.rel (%p613) target = $region64
      $region63: #{res_block2d_forward.3} parent=59 // pred_region
        %p616 = scmp.lt.s32.totalorder %s21, 1
        %s617 = scalar_select %p616, %s21, 1
        %s618 = smul.addr %s617, 2
        %s619 = smul.addr %s618, 4
        %s620 = scalar_lea.vmem %s6, %s619
      $region64: #{res_block2d_forward.3} parent=59 // pred_fallthru
        _
      // Predicated region
      $region65: #{res_block2d_forward.3} parent=59 // pred_check
        %p621 = pneg %p201
      $region66: #{res_block2d_forward.3} parent=59 // pred_check_branch
        %623 = sbr.rel (%p621) target = $region68
      $region67: #{res_block2d_forward.3} parent=59 // pred_region
        %p624 = scmp.lt.s32.totalorder %s21, 1
        %s625 = scalar_select %p624, %s21, 1
        %s626 = smul.addr %s625, 8
        %s627 = scalar_lea.vmem %s7, %s626
      $region68: #{res_block2d_forward.3} parent=59 // pred_fallthru
        _
      // Predicated region
      $region69: #{res_block2d_forward.3} parent=59 // pred_check
        %p628 = pneg %p227
      $region70: #{res_block2d_forward.3} parent=59 // pred_check_branch
        %630 = sbr.rel (%p628) target = $region72
      $region71: #{res_block2d_forward.3} parent=59 // pred_region
        %p631 = scmp.lt.s32.totalorder %s21, 1
        %s632 = scalar_select %p631, %s21, 1
        %s633 = smul.addr %s632, 8
        %s634 = scalar_lea.vmem %s8, %s633
      $region72: #{res_block2d_forward.3} parent=59 // pred_fallthru
        _
    $region60: #{res_block2d_forward.3} parent=5 // pred_fallthru
      _
  $region6: #{res_block2d_forward.3} parent=0 // loop_footer
    %s19 = sadd.s32 1, %s15
  $region7: #{res_block2d_forward.3} parent=0 // loop_footer_branch
    %14 = sbr.rel target = $region3
  $region8: #{res_block2d_forward.3} parent=0 // loop_exit
    _

</llo_original>
